<compile_context>
chip_gen: v6e
topology: v6e:2x2x1
jax: 0.10.0
libtpu: 0.0.40
codegen_flags: <defaults>
</compile_context>

<pallas_src>
import functools

import jax
import jax.numpy as jnp
from jax import lax
from jax.experimental import pallas as pl
from jax.experimental.pallas import tpu as pltpu


def lstm_forecaster_kernel(x_ref, wih0_ref, w_blk_ref, b0_ref, wih1_ref,
                           b1_ref, wfc_ref, bfc_ref, out_ref, xg_sc,
                           *, seq_len, batch, hidden_dim, input_dim):
    T, B, H, D = seq_len, batch, hidden_dim, input_dim

    # ---- hoisted, loop-invariant values --------------------------------
    # Only hoist small weights into values; at large H the whole-ref read just
    # inflates vreg pressure — let the matmul read straight from VMEM instead.
    hoist_weights = H <= 64
    w_blk_h = w_blk_ref[...] if hoist_weights else None     # (2H, 8H)
    wih1_h = wih1_ref[...] if hoist_weights else None       # (H, 4H)
    b1b = jnp.broadcast_to(b1_ref[...], (B, 4 * H))         # hoisted broadcast

    # sigmoid(x) = 0.5*(tanh(x/2)+1): one full-width tanh EUP pass covers the
    # i/f/o (sigmoid) lanes AND the g (tanh) lanes.  Gate order: i,f,g,o.
    lane = lax.broadcasted_iota(jnp.int32, (B, 4 * H), 1)
    is_g = (lane >= 2 * H) & (lane < 3 * H)
    gate_scale = jnp.where(is_g, jnp.float32(1.0), jnp.float32(0.5))
    gate_shift = jnp.where(is_g, jnp.float32(0.0), jnp.float32(0.5))

    # ---- layer-0 input->gate contribution for ALL timesteps -----------
    if D == 1:
        # K=1 matmul is a pure outer product -> VPU broadcast mul-add instead.
        xg = x_ref[...] * wih0_ref[...] + b0_ref[...]
    else:
        xg = jnp.dot(x_ref[...], wih0_ref[...],
                     preferred_element_type=jnp.float32) + b0_ref[...]
    xg_sc[...] = xg.astype(xg_sc.dtype)

    def gates_to_hc(gates, c):
        t = jnp.tanh(gates * gate_scale)     # single EUP pass over 4H lanes
        a = t * gate_scale + gate_shift      # [sig(i) | sig(f) | tanh(g) | sig(o)]
        i_g = a[:, 0 * H:1 * H]
        f_g = a[:, 1 * H:2 * H]
        g_g = a[:, 2 * H:3 * H]
        o_g = a[:, 3 * H:4 * H]
        c_new = f_g * c + i_g * g_g
        h_new = o_g * jnp.tanh(c_new)
        return h_new, c_new

    def step(t, carry):
        h01, c0, c1 = carry
        wb = w_blk_h if hoist_weights else w_blk_ref[...]
        wi1 = wih1_h if hoist_weights else wih1_ref[...]
        # One wide MXU issue computes BOTH h-recurrences:
        #   [h0 | h1] @ blockdiag(W_hh0, W_hh1) = [h0@W_hh0 | h1@W_hh1]
        hh = jnp.dot(h01, wb, preferred_element_type=jnp.float32)   # (B, 8H)
        row = pl.multiple_of(t * B, B)
        g0 = xg_sc[pl.ds(row, B), :].astype(jnp.float32) + hh[:, :4 * H]
        h0, c0 = gates_to_hc(g0, c0)
        # layer 1: only h0_t @ W_ih1 is left on the serial chain
        g1 = (jnp.dot(h0, wi1, preferred_element_type=jnp.float32)
              + hh[:, 4 * H:] + b1b)
        h1, c1 = gates_to_hc(g1, c1)
        return jnp.concatenate([h0, h1], axis=1), c0, c1

    zH = jnp.zeros((B, H), jnp.float32)
    z2H = jnp.zeros((B, 2 * H), jnp.float32)
    unroll = True if T <= 32 else 8      # cap unroll: avoid i-mem/vreg blow-up
    h01, _, _ = lax.fori_loop(0, T, step, (z2H, zH, zH), unroll=unroll)
    h1 = h01[:, H:]

    # TODO(synk): nn.Dropout / LSTM inter-layer dropout are identity in eval
    #             mode; training-mode stochastic dropout is not implemented.
    out_ref[...] = (jnp.dot(h1, wfc_ref[...],
                            preferred_element_type=jnp.float32) + bfc_ref[...])


def lstm_forecaster(x, params, *, hidden_dim, out_steps):
    """x: (B, T, D) float32, batch-first like PyTorch."""
    B, T, D = x.shape
    H = hidden_dim
    wih0, whh0, b0, wih1, whh1, b1, wfc, bfc = params

    # Sublane-align the batch (f32 sublane = 8); lane-align the output (128).
    Bp = max(8, ((B + 7) // 8) * 8)
    OUTP = ((out_steps + 127) // 128) * 128

    # Time-major, flattened to (T*Bp, D): each step reads a contiguous,
    # sublane-aligned (Bp, 4H) slab of the precomputed gate scratch.
    x_p = jnp.pad(x, ((0, Bp - B), (0, 0), (0, 0)))
    x2d = jnp.transpose(x_p, (1, 0, 2)).reshape(T * Bp, D)

    # Block-diagonal recurrent weight: one MXU issue per step computes
    # h0@W_hh0 and h1@W_hh1 together (fills the 256-wide v6e/v7x MXU).
    w_blk = jnp.zeros((2 * H, 8 * H), jnp.float32)
    w_blk = w_blk.at[:H, :4 * H].set(whh0)
    w_blk = w_blk.at[H:, 4 * H:].set(whh1)

    wfc_p = jnp.pad(wfc, ((0, 0), (0, OUTP - out_steps)))
    bfc_p = jnp.pad(bfc, ((0, 0), (0, OUTP - out_steps)))

    # xg scratch holds x@W_ih0+b0 for all T steps; drop to bf16 once large so
    # the single-kernel design still fits v7x's 64 MiB VMEM (state stays f32).
    xg_dtype = jnp.float32 if T * Bp * 4 * H * 4 <= (24 << 20) else jnp.bfloat16

    kernel = functools.partial(lstm_forecaster_kernel, seq_len=T, batch=Bp,
                               hidden_dim=H, input_dim=D)
    # No grid: single invocation; every operand whole-array in VMEM,
    # single-buffered (no dead double-buffer copies of x2d / weights / output).
    out_p = pl.pallas_call(
        kernel,
        out_shape=jax.ShapeDtypeStruct((Bp, OUTP), jnp.float32),
        in_specs=[pl.BlockSpec(memory_space=pltpu.MemorySpace.VMEM)] * 8,
        out_specs=pl.BlockSpec(memory_space=pltpu.MemorySpace.VMEM),
        scratch_shapes=[pltpu.VMEM((T * Bp, 4 * H), xg_dtype)],
    )(x2d, wih0, w_blk, b0, wih1, b1, wfc_p, bfc_p)
    # TODO(synk): for batch >= 16 on v7x add a leading "parallel" batch-block
    #             grid axis so the second TensorCore gets half the rows.
    return out_p[:B, :out_steps]


def init_params(key, input_dim, hidden_dim, out_steps):
    """Deterministic init mirroring PyTorch shapes (stored pre-transposed)."""
    H = hidden_dim
    k = 1.0 / jnp.sqrt(jnp.float32(H))
    keys = jax.random.split(key, 12)

    def u(kk, shape):
        return jax.random.uniform(kk, shape, jnp.float32, -k, k)

    # layer 0: W_ih (4H, D) -> (D, 4H); W_hh (4H, H) -> (H, 4H); b_ih + b_hh
    wih0 = u(keys[0], (input_dim, 4 * H))
    whh0 = u(keys[1], (H, 4 * H))
    b0 = (u(keys[2], (1, 4 * H)) + u(keys[3], (1, 4 * H)))
    # layer 1: input is previous layer's hidden state
    wih1 = u(keys[4], (H, 4 * H))
    whh1 = u(keys[5], (H, 4 * H))
    b1 = (u(keys[6], (1, 4 * H)) + u(keys[7], (1, 4 * H)))
    # fc: (out_steps, H) -> (H, out_steps)
    kf = 1.0 / jnp.sqrt(jnp.float32(H))
    wfc = jax.random.uniform(keys[8], (H, out_steps), jnp.float32, -kf, kf)
    bfc = jax.random.uniform(keys[9], (1, out_steps), jnp.float32, -kf, kf)
    return (wih0, whh0, b0, wih1, whh1, b1, wfc, bfc)


def lstm_forecaster_ref(x, params, *, hidden_dim, out_steps):
    """Pure-JAX reference (eval-mode semantics) for validation."""
    B, T, D = x.shape
    H = hidden_dim
    wih0, whh0, b0, wih1, whh1, b1, wfc, bfc = params

    def cell(x_in, h, c, wih, whh, b):
        g = x_in @ wih + h @ whh + b
        i = jax.nn.sigmoid(g[:, 0 * H:1 * H])
        f = jax.nn.sigmoid(g[:, 1 * H:2 * H])
        gg = jnp.tanh(g[:, 2 * H:3 * H])
        o = jax.nn.sigmoid(g[:, 3 * H:4 * H])
        c_new = f * c + i * gg
        h_new = o * jnp.tanh(c_new)
        return h_new, c_new

    h0 = jnp.zeros((B, H), jnp.float32)
    c0 = jnp.zeros((B, H), jnp.float32)
    h1 = jnp.zeros((B, H), jnp.float32)
    c1 = jnp.zeros((B, H), jnp.float32)
    for t in range(T):
        h0, c0 = cell(x[:, t, :], h0, c0, wih0, whh0, b0)
        h1, c1 = cell(h0, h1, c1, wih1, whh1, b1)
    return h1 @ wfc + bfc


if __name__ == "__main__":
    B, T = 2, 8
    INPUT_DIM, HIDDEN_DIM, OUT_STEPS = 1, 32, 16

    key = jax.random.PRNGKey(0)
    k_x, k_p = jax.random.split(key)
    x = jax.random.normal(k_x, (B, T, INPUT_DIM), jnp.float32)
    params = init_params(k_p, INPUT_DIM, HIDDEN_DIM, OUT_STEPS)

    out = lstm_forecaster(x, params, hidden_dim=HIDDEN_DIM, out_steps=OUT_STEPS)
    out = jax.block_until_ready(out)

    ref = lstm_forecaster_ref(x, params, hidden_dim=HIDDEN_DIM, out_steps=OUT_STEPS)
    assert out.shape == (B, OUT_STEPS)
    assert jnp.allclose(out, ref, atol=1e-3, rtol=1e-3), "mismatch vs reference"

    print("KERNEL_OK")
</pallas_src>

<mosaic_0001>
module attributes {stable_mosaic.version = 11 : i64} {
  func.func @lstm_forecaster_kernel(%arg0: memref<64x1xf32, #tpu.memory_space<vmem>>, %arg1: memref<1x128xf32, #tpu.memory_space<vmem>>, %arg2: memref<64x256xf32, #tpu.memory_space<vmem>>, %arg3: memref<1x128xf32, #tpu.memory_space<vmem>>, %arg4: memref<32x128xf32, #tpu.memory_space<vmem>>, %arg5: memref<1x128xf32, #tpu.memory_space<vmem>>, %arg6: memref<32x128xf32, #tpu.memory_space<vmem>>, %arg7: memref<1x128xf32, #tpu.memory_space<vmem>>, %arg8: memref<8x128xf32, #tpu.memory_space<vmem>>, %arg9: memref<64x128xf32, #tpu.memory_space<vmem>>) attributes {dimension_semantics = [], scalar_prefetch = 0 : i64, scratch_operands = 1 : i64, tpu.core_type = #tpu.core_type<tc>} {
    %c0 = arith.constant 0 : index
    %c0_0 = arith.constant 0 : index
    %0 = vector.load %arg2[%c0, %c0_0] : memref<64x256xf32, #tpu.memory_space<vmem>>, vector<64x256xf32>
    %c0_1 = arith.constant 0 : index
    %c0_2 = arith.constant 0 : index
    %1 = vector.load %arg4[%c0_1, %c0_2] : memref<32x128xf32, #tpu.memory_space<vmem>>, vector<32x128xf32>
    %c0_3 = arith.constant 0 : index
    %c0_4 = arith.constant 0 : index
    %2 = vector.load %arg5[%c0_3, %c0_4] : memref<1x128xf32, #tpu.memory_space<vmem>>, vector<1x128xf32>
    %3 = vector.shape_cast %2 : vector<1x128xf32> to vector<1x128xf32>
    %4 = vector.broadcast %3 : vector<1x128xf32> to vector<8x128xf32>
    %5 = tpu.iota {dimensions = array<i32: 1>} : vector<8x128xi32>
    %c64_i32 = arith.constant 64 : i32
    %6 = vector.broadcast %c64_i32 : i32 to vector<8x128xi32>
    %7 = arith.cmpi sge, %5, %6 : vector<8x128xi32>
    %c96_i32 = arith.constant 96 : i32
    %8 = vector.broadcast %c96_i32 : i32 to vector<8x128xi32>
    %9 = arith.cmpi slt, %5, %8 : vector<8x128xi32>
    %10 = arith.andi %7, %9 : vector<8x128xi1>
    %cst = arith.constant 1.000000e+00 : f32
    %cst_5 = arith.constant 5.000000e-01 : f32
    %11 = vector.broadcast %cst : f32 to vector<8x128xf32>
    %12 = vector.broadcast %cst_5 : f32 to vector<8x128xf32>
    %13 = arith.select %10, %11, %12 : vector<8x128xi1>, vector<8x128xf32>
    %cst_6 = arith.constant 0.000000e+00 : f32
    %cst_7 = arith.constant 5.000000e-01 : f32
    %14 = vector.broadcast %cst_6 : f32 to vector<8x128xf32>
    %15 = vector.broadcast %cst_7 : f32 to vector<8x128xf32>
    %16 = arith.select %10, %14, %15 : vector<8x128xi1>, vector<8x128xf32>
    %c0_8 = arith.constant 0 : index
    %c0_9 = arith.constant 0 : index
    %17 = vector.load %arg0[%c0_8, %c0_9] : memref<64x1xf32, #tpu.memory_space<vmem>>, vector<64x1xf32>
    %c0_10 = arith.constant 0 : index
    %c0_11 = arith.constant 0 : index
    %18 = vector.load %arg1[%c0_10, %c0_11] : memref<1x128xf32, #tpu.memory_space<vmem>>, vector<1x128xf32>
    %19 = vector.broadcast %17 : vector<64x1xf32> to vector<64x128xf32>
    %20 = vector.broadcast %18 : vector<1x128xf32> to vector<64x128xf32>
    %21 = arith.mulf %19, %20 : vector<64x128xf32>
    %c0_12 = arith.constant 0 : index
    %c0_13 = arith.constant 0 : index
    %22 = vector.load %arg3[%c0_12, %c0_13] : memref<1x128xf32, #tpu.memory_space<vmem>>, vector<1x128xf32>
    %23 = vector.broadcast %22 : vector<1x128xf32> to vector<64x128xf32>
    %24 = arith.addf %21, %23 : vector<64x128xf32>
    %c0_14 = arith.constant 0 : index
    %c0_15 = arith.constant 0 : index
    %25 = vector.load %arg9[%c0_14, %c0_15] : memref<64x128xf32, #tpu.memory_space<vmem>>, vector<64x128xf32>
    tpu.vector_store %arg9[%c0_14, %c0_15], %24 {strides = array<i32>} : memref<64x128xf32, #tpu.memory_space<vmem>>, vector<64x128xf32>,
    %cst_16 = arith.constant 0.000000e+00 : f32
    %26 = vector.broadcast %cst_16 : f32 to vector<8x32xf32>
    %cst_17 = arith.constant 0.000000e+00 : f32
    %27 = vector.broadcast %cst_17 : f32 to vector<8x64xf32>
    %c0_i32 = arith.constant 0 : i32
    %cst_18 = arith.constant dense<0.000000e+00> : vector<8x256xf32>
    %28 = tpu.matmul %27, %0, %cst_18 {dimension_numbers = #tpu.dot_dimension_numbers<[1], [0], [0], [1], [0, 0, 1, 1], [], []>} : vector<8x64xf32>, vector<64x256xf32>, vector<8x256xf32> -> vector<8x256xf32>
    %c8_i32 = arith.constant 8 : i32
    %29 = arith.muli %c0_i32, %c8_i32 : i32
    %30 = tpu.assume_multiple %29, 8 : i32
    %31 = arith.index_cast %30 : i32 to index
    %c0_19 = arith.constant 0 : index
    %32 = vector.load %arg9[%31, %c0_19] : memref<64x128xf32, #tpu.memory_space<vmem>>, vector<8x128xf32>
    %33 = vector.extract_strided_slice %28 {offsets = [0, 0], sizes = [8, 128], strides = [1, 1]} : vector<8x256xf32> to vector<8x128xf32>
    %34 = arith.addf %32, %33 : vector<8x128xf32>
    %35 = arith.mulf %34, %13 : vector<8x128xf32>
    %36 = math.tanh %35 : vector<8x128xf32>
    %37 = arith.mulf %36, %13 : vector<8x128xf32>
    %38 = arith.addf %37, %16 : vector<8x128xf32>
    %39 = vector.extract_strided_slice %38 {offsets = [0, 0], sizes = [8, 32], strides = [1, 1]} : vector<8x128xf32> to vector<8x32xf32>
    %40 = vector.extract_strided_slice %38 {offsets = [0, 32], sizes = [8, 32], strides = [1, 1]} : vector<8x128xf32> to vector<8x32xf32>
    %41 = vector.extract_strided_slice %38 {offsets = [0, 64], sizes = [8, 32], strides = [1, 1]} : vector<8x128xf32> to vector<8x32xf32>
    %42 = vector.extract_strided_slice %38 {offsets = [0, 96], sizes = [8, 32], strides = [1, 1]} : vector<8x128xf32> to vector<8x32xf32>
    %43 = arith.mulf %40, %26 : vector<8x32xf32>
    %44 = arith.mulf %39, %41 : vector<8x32xf32>
    %45 = arith.addf %43, %44 : vector<8x32xf32>
    %46 = math.tanh %45 : vector<8x32xf32>
    %47 = arith.mulf %42, %46 : vector<8x32xf32>
    %cst_20 = arith.constant dense<0.000000e+00> : vector<8x128xf32>
    %48 = tpu.matmul %47, %1, %cst_20 {dimension_numbers = #tpu.dot_dimension_numbers<[1], [0], [0], [1], [0, 0, 1, 1], [], []>} : vector<8x32xf32>, vector<32x128xf32>, vector<8x128xf32> -> vector<8x128xf32>
    %49 = vector.extract_strided_slice %28 {offsets = [0, 128], sizes = [8, 128], strides = [1, 1]} : vector<8x256xf32> to vector<8x128xf32>
    %50 = arith.addf %48, %49 : vector<8x128xf32>
    %51 = arith.addf %50, %4 : vector<8x128xf32>
    %52 = arith.mulf %51, %13 : vector<8x128xf32>
    %53 = math.tanh %52 : vector<8x128xf32>
    %54 = arith.mulf %53, %13 : vector<8x128xf32>
    %55 = arith.addf %54, %16 : vector<8x128xf32>
    %56 = vector.extract_strided_slice %55 {offsets = [0, 0], sizes = [8, 32], strides = [1, 1]} : vector<8x128xf32> to vector<8x32xf32>
    %57 = vector.extract_strided_slice %55 {offsets = [0, 32], sizes = [8, 32], strides = [1, 1]} : vector<8x128xf32> to vector<8x32xf32>
    %58 = vector.extract_strided_slice %55 {offsets = [0, 64], sizes = [8, 32], strides = [1, 1]} : vector<8x128xf32> to vector<8x32xf32>
    %59 = vector.extract_strided_slice %55 {offsets = [0, 96], sizes = [8, 32], strides = [1, 1]} : vector<8x128xf32> to vector<8x32xf32>
    %60 = arith.mulf %57, %26 : vector<8x32xf32>
    %61 = arith.mulf %56, %58 : vector<8x32xf32>
    %62 = arith.addf %60, %61 : vector<8x32xf32>
    %63 = math.tanh %62 : vector<8x32xf32>
    %64 = arith.mulf %59, %63 : vector<8x32xf32>
    %65 = tpu.concatenate %47, %64 in 1 : vector<8x32xf32>, vector<8x32xf32> -> vector<8x64xf32>
    %c1_i32 = arith.constant 1 : i32
    %cst_21 = arith.constant dense<0.000000e+00> : vector<8x256xf32>
    %66 = tpu.matmul %65, %0, %cst_21 {dimension_numbers = #tpu.dot_dimension_numbers<[1], [0], [0], [1], [0, 0, 1, 1], [], []>} : vector<8x64xf32>, vector<64x256xf32>, vector<8x256xf32> -> vector<8x256xf32>
    %c8_i32_22 = arith.constant 8 : i32
    %67 = arith.muli %c1_i32, %c8_i32_22 : i32
    %68 = tpu.assume_multiple %67, 8 : i32
    %69 = arith.index_cast %68 : i32 to index
    %c0_23 = arith.constant 0 : index
    %70 = vector.load %arg9[%69, %c0_23] : memref<64x128xf32, #tpu.memory_space<vmem>>, vector<8x128xf32>
    %71 = vector.extract_strided_slice %66 {offsets = [0, 0], sizes = [8, 128], strides = [1, 1]} : vector<8x256xf32> to vector<8x128xf32>
    %72 = arith.addf %70, %71 : vector<8x128xf32>
    %73 = arith.mulf %72, %13 : vector<8x128xf32>
    %74 = math.tanh %73 : vector<8x128xf32>
    %75 = arith.mulf %74, %13 : vector<8x128xf32>
    %76 = arith.addf %75, %16 : vector<8x128xf32>
    %77 = vector.extract_strided_slice %76 {offsets = [0, 0], sizes = [8, 32], strides = [1, 1]} : vector<8x128xf32> to vector<8x32xf32>
    %78 = vector.extract_strided_slice %76 {offsets = [0, 32], sizes = [8, 32], strides = [1, 1]} : vector<8x128xf32> to vector<8x32xf32>
    %79 = vector.extract_strided_slice %76 {offsets = [0, 64], sizes = [8, 32], strides = [1, 1]} : vector<8x128xf32> to vector<8x32xf32>
    %80 = vector.extract_strided_slice %76 {offsets = [0, 96], sizes = [8, 32], strides = [1, 1]} : vector<8x128xf32> to vector<8x32xf32>
    %81 = arith.mulf %78, %45 : vector<8x32xf32>
    %82 = arith.mulf %77, %79 : vector<8x32xf32>
    %83 = arith.addf %81, %82 : vector<8x32xf32>
    %84 = math.tanh %83 : vector<8x32xf32>
    %85 = arith.mulf %80, %84 : vector<8x32xf32>
    %cst_24 = arith.constant dense<0.000000e+00> : vector<8x128xf32>
    %86 = tpu.matmul %85, %1, %cst_24 {dimension_numbers = #tpu.dot_dimension_numbers<[1], [0], [0], [1], [0, 0, 1, 1], [], []>} : vector<8x32xf32>, vector<32x128xf32>, vector<8x128xf32> -> vector<8x128xf32>
    %87 = vector.extract_strided_slice %66 {offsets = [0, 128], sizes = [8, 128], strides = [1, 1]} : vector<8x256xf32> to vector<8x128xf32>
    %88 = arith.addf %86, %87 : vector<8x128xf32>
    %89 = arith.addf %88, %4 : vector<8x128xf32>
    %90 = arith.mulf %89, %13 : vector<8x128xf32>
    %91 = math.tanh %90 : vector<8x128xf32>
    %92 = arith.mulf %91, %13 : vector<8x128xf32>
    %93 = arith.addf %92, %16 : vector<8x128xf32>
    %94 = vector.extract_strided_slice %93 {offsets = [0, 0], sizes = [8, 32], strides = [1, 1]} : vector<8x128xf32> to vector<8x32xf32>
    %95 = vector.extract_strided_slice %93 {offsets = [0, 32], sizes = [8, 32], strides = [1, 1]} : vector<8x128xf32> to vector<8x32xf32>
    %96 = vector.extract_strided_slice %93 {offsets = [0, 64], sizes = [8, 32], strides = [1, 1]} : vector<8x128xf32> to vector<8x32xf32>
    %97 = vector.extract_strided_slice %93 {offsets = [0, 96], sizes = [8, 32], strides = [1, 1]} : vector<8x128xf32> to vector<8x32xf32>
    %98 = arith.mulf %95, %62 : vector<8x32xf32>
    %99 = arith.mulf %94, %96 : vector<8x32xf32>
    %100 = arith.addf %98, %99 : vector<8x32xf32>
    %101 = math.tanh %100 : vector<8x32xf32>
    %102 = arith.mulf %97, %101 : vector<8x32xf32>
    %103 = tpu.concatenate %85, %102 in 1 : vector<8x32xf32>, vector<8x32xf32> -> vector<8x64xf32>
    %c2_i32 = arith.constant 2 : i32
    %cst_25 = arith.constant dense<0.000000e+00> : vector<8x256xf32>
    %104 = tpu.matmul %103, %0, %cst_25 {dimension_numbers = #tpu.dot_dimension_numbers<[1], [0], [0], [1], [0, 0, 1, 1], [], []>} : vector<8x64xf32>, vector<64x256xf32>, vector<8x256xf32> -> vector<8x256xf32>
    %c8_i32_26 = arith.constant 8 : i32
    %105 = arith.muli %c2_i32, %c8_i32_26 : i32
    %106 = tpu.assume_multiple %105, 8 : i32
    %107 = arith.index_cast %106 : i32 to index
    %c0_27 = arith.constant 0 : index
    %108 = vector.load %arg9[%107, %c0_27] : memref<64x128xf32, #tpu.memory_space<vmem>>, vector<8x128xf32>
    %109 = vector.extract_strided_slice %104 {offsets = [0, 0], sizes = [8, 128], strides = [1, 1]} : vector<8x256xf32> to vector<8x128xf32>
    %110 = arith.addf %108, %109 : vector<8x128xf32>
    %111 = arith.mulf %110, %13 : vector<8x128xf32>
    %112 = math.tanh %111 : vector<8x128xf32>
    %113 = arith.mulf %112, %13 : vector<8x128xf32>
    %114 = arith.addf %113, %16 : vector<8x128xf32>
    %115 = vector.extract_strided_slice %114 {offsets = [0, 0], sizes = [8, 32], strides = [1, 1]} : vector<8x128xf32> to vector<8x32xf32>
    %116 = vector.extract_strided_slice %114 {offsets = [0, 32], sizes = [8, 32], strides = [1, 1]} : vector<8x128xf32> to vector<8x32xf32>
    %117 = vector.extract_strided_slice %114 {offsets = [0, 64], sizes = [8, 32], strides = [1, 1]} : vector<8x128xf32> to vector<8x32xf32>
    %118 = vector.extract_strided_slice %114 {offsets = [0, 96], sizes = [8, 32], strides = [1, 1]} : vector<8x128xf32> to vector<8x32xf32>
    %119 = arith.mulf %116, %83 : vector<8x32xf32>
    %120 = arith.mulf %115, %117 : vector<8x32xf32>
    %121 = arith.addf %119, %120 : vector<8x32xf32>
    %122 = math.tanh %121 : vector<8x32xf32>
    %123 = arith.mulf %118, %122 : vector<8x32xf32>
    %cst_28 = arith.constant dense<0.000000e+00> : vector<8x128xf32>
    %124 = tpu.matmul %123, %1, %cst_28 {dimension_numbers = #tpu.dot_dimension_numbers<[1], [0], [0], [1], [0, 0, 1, 1], [], []>} : vector<8x32xf32>, vector<32x128xf32>, vector<8x128xf32> -> vector<8x128xf32>
    %125 = vector.extract_strided_slice %104 {offsets = [0, 128], sizes = [8, 128], strides = [1, 1]} : vector<8x256xf32> to vector<8x128xf32>
    %126 = arith.addf %124, %125 : vector<8x128xf32>
    %127 = arith.addf %126, %4 : vector<8x128xf32>
    %128 = arith.mulf %127, %13 : vector<8x128xf32>
    %129 = math.tanh %128 : vector<8x128xf32>
    %130 = arith.mulf %129, %13 : vector<8x128xf32>
    %131 = arith.addf %130, %16 : vector<8x128xf32>
    %132 = vector.extract_strided_slice %131 {offsets = [0, 0], sizes = [8, 32], strides = [1, 1]} : vector<8x128xf32> to vector<8x32xf32>
    %133 = vector.extract_strided_slice %131 {offsets = [0, 32], sizes = [8, 32], strides = [1, 1]} : vector<8x128xf32> to vector<8x32xf32>
    %134 = vector.extract_strided_slice %131 {offsets = [0, 64], sizes = [8, 32], strides = [1, 1]} : vector<8x128xf32> to vector<8x32xf32>
    %135 = vector.extract_strided_slice %131 {offsets = [0, 96], sizes = [8, 32], strides = [1, 1]} : vector<8x128xf32> to vector<8x32xf32>
    %136 = arith.mulf %133, %100 : vector<8x32xf32>
    %137 = arith.mulf %132, %134 : vector<8x32xf32>
    %138 = arith.addf %136, %137 : vector<8x32xf32>
    %139 = math.tanh %138 : vector<8x32xf32>
    %140 = arith.mulf %135, %139 : vector<8x32xf32>
    %141 = tpu.concatenate %123, %140 in 1 : vector<8x32xf32>, vector<8x32xf32> -> vector<8x64xf32>
    %c3_i32 = arith.constant 3 : i32
    %cst_29 = arith.constant dense<0.000000e+00> : vector<8x256xf32>
    %142 = tpu.matmul %141, %0, %cst_29 {dimension_numbers = #tpu.dot_dimension_numbers<[1], [0], [0], [1], [0, 0, 1, 1], [], []>} : vector<8x64xf32>, vector<64x256xf32>, vector<8x256xf32> -> vector<8x256xf32>
    %c8_i32_30 = arith.constant 8 : i32
    %143 = arith.muli %c3_i32, %c8_i32_30 : i32
    %144 = tpu.assume_multiple %143, 8 : i32
    %145 = arith.index_cast %144 : i32 to index
    %c0_31 = arith.constant 0 : index
    %146 = vector.load %arg9[%145, %c0_31] : memref<64x128xf32, #tpu.memory_space<vmem>>, vector<8x128xf32>
    %147 = vector.extract_strided_slice %142 {offsets = [0, 0], sizes = [8, 128], strides = [1, 1]} : vector<8x256xf32> to vector<8x128xf32>
    %148 = arith.addf %146, %147 : vector<8x128xf32>
    %149 = arith.mulf %148, %13 : vector<8x128xf32>
    %150 = math.tanh %149 : vector<8x128xf32>
    %151 = arith.mulf %150, %13 : vector<8x128xf32>
    %152 = arith.addf %151, %16 : vector<8x128xf32>
    %153 = vector.extract_strided_slice %152 {offsets = [0, 0], sizes = [8, 32], strides = [1, 1]} : vector<8x128xf32> to vector<8x32xf32>
    %154 = vector.extract_strided_slice %152 {offsets = [0, 32], sizes = [8, 32], strides = [1, 1]} : vector<8x128xf32> to vector<8x32xf32>
    %155 = vector.extract_strided_slice %152 {offsets = [0, 64], sizes = [8, 32], strides = [1, 1]} : vector<8x128xf32> to vector<8x32xf32>
    %156 = vector.extract_strided_slice %152 {offsets = [0, 96], sizes = [8, 32], strides = [1, 1]} : vector<8x128xf32> to vector<8x32xf32>
    %157 = arith.mulf %154, %121 : vector<8x32xf32>
    %158 = arith.mulf %153, %155 : vector<8x32xf32>
    %159 = arith.addf %157, %158 : vector<8x32xf32>
    %160 = math.tanh %159 : vector<8x32xf32>
    %161 = arith.mulf %156, %160 : vector<8x32xf32>
    %cst_32 = arith.constant dense<0.000000e+00> : vector<8x128xf32>
    %162 = tpu.matmul %161, %1, %cst_32 {dimension_numbers = #tpu.dot_dimension_numbers<[1], [0], [0], [1], [0, 0, 1, 1], [], []>} : vector<8x32xf32>, vector<32x128xf32>, vector<8x128xf32> -> vector<8x128xf32>
    %163 = vector.extract_strided_slice %142 {offsets = [0, 128], sizes = [8, 128], strides = [1, 1]} : vector<8x256xf32> to vector<8x128xf32>
    %164 = arith.addf %162, %163 : vector<8x128xf32>
    %165 = arith.addf %164, %4 : vector<8x128xf32>
    %166 = arith.mulf %165, %13 : vector<8x128xf32>
    %167 = math.tanh %166 : vector<8x128xf32>
    %168 = arith.mulf %167, %13 : vector<8x128xf32>
    %169 = arith.addf %168, %16 : vector<8x128xf32>
    %170 = vector.extract_strided_slice %169 {offsets = [0, 0], sizes = [8, 32], strides = [1, 1]} : vector<8x128xf32> to vector<8x32xf32>
    %171 = vector.extract_strided_slice %169 {offsets = [0, 32], sizes = [8, 32], strides = [1, 1]} : vector<8x128xf32> to vector<8x32xf32>
    %172 = vector.extract_strided_slice %169 {offsets = [0, 64], sizes = [8, 32], strides = [1, 1]} : vector<8x128xf32> to vector<8x32xf32>
    %173 = vector.extract_strided_slice %169 {offsets = [0, 96], sizes = [8, 32], strides = [1, 1]} : vector<8x128xf32> to vector<8x32xf32>
    %174 = arith.mulf %171, %138 : vector<8x32xf32>
    %175 = arith.mulf %170, %172 : vector<8x32xf32>
    %176 = arith.addf %174, %175 : vector<8x32xf32>
    %177 = math.tanh %176 : vector<8x32xf32>
    %178 = arith.mulf %173, %177 : vector<8x32xf32>
    %179 = tpu.concatenate %161, %178 in 1 : vector<8x32xf32>, vector<8x32xf32> -> vector<8x64xf32>
    %c4_i32 = arith.constant 4 : i32
    %cst_33 = arith.constant dense<0.000000e+00> : vector<8x256xf32>
    %180 = tpu.matmul %179, %0, %cst_33 {dimension_numbers = #tpu.dot_dimension_numbers<[1], [0], [0], [1], [0, 0, 1, 1], [], []>} : vector<8x64xf32>, vector<64x256xf32>, vector<8x256xf32> -> vector<8x256xf32>
    %c8_i32_34 = arith.constant 8 : i32
    %181 = arith.muli %c4_i32, %c8_i32_34 : i32
    %182 = tpu.assume_multiple %181, 8 : i32
    %183 = arith.index_cast %182 : i32 to index
    %c0_35 = arith.constant 0 : index
    %184 = vector.load %arg9[%183, %c0_35] : memref<64x128xf32, #tpu.memory_space<vmem>>, vector<8x128xf32>
    %185 = vector.extract_strided_slice %180 {offsets = [0, 0], sizes = [8, 128], strides = [1, 1]} : vector<8x256xf32> to vector<8x128xf32>
    %186 = arith.addf %184, %185 : vector<8x128xf32>
    %187 = arith.mulf %186, %13 : vector<8x128xf32>
    %188 = math.tanh %187 : vector<8x128xf32>
    %189 = arith.mulf %188, %13 : vector<8x128xf32>
    %190 = arith.addf %189, %16 : vector<8x128xf32>
    %191 = vector.extract_strided_slice %190 {offsets = [0, 0], sizes = [8, 32], strides = [1, 1]} : vector<8x128xf32> to vector<8x32xf32>
    %192 = vector.extract_strided_slice %190 {offsets = [0, 32], sizes = [8, 32], strides = [1, 1]} : vector<8x128xf32> to vector<8x32xf32>
    %193 = vector.extract_strided_slice %190 {offsets = [0, 64], sizes = [8, 32], strides = [1, 1]} : vector<8x128xf32> to vector<8x32xf32>
    %194 = vector.extract_strided_slice %190 {offsets = [0, 96], sizes = [8, 32], strides = [1, 1]} : vector<8x128xf32> to vector<8x32xf32>
    %195 = arith.mulf %192, %159 : vector<8x32xf32>
    %196 = arith.mulf %191, %193 : vector<8x32xf32>
    %197 = arith.addf %195, %196 : vector<8x32xf32>
    %198 = math.tanh %197 : vector<8x32xf32>
    %199 = arith.mulf %194, %198 : vector<8x32xf32>
    %cst_36 = arith.constant dense<0.000000e+00> : vector<8x128xf32>
    %200 = tpu.matmul %199, %1, %cst_36 {dimension_numbers = #tpu.dot_dimension_numbers<[1], [0], [0], [1], [0, 0, 1, 1], [], []>} : vector<8x32xf32>, vector<32x128xf32>, vector<8x128xf32> -> vector<8x128xf32>
    %201 = vector.extract_strided_slice %180 {offsets = [0, 128], sizes = [8, 128], strides = [1, 1]} : vector<8x256xf32> to vector<8x128xf32>
    %202 = arith.addf %200, %201 : vector<8x128xf32>
    %203 = arith.addf %202, %4 : vector<8x128xf32>
    %204 = arith.mulf %203, %13 : vector<8x128xf32>
    %205 = math.tanh %204 : vector<8x128xf32>
    %206 = arith.mulf %205, %13 : vector<8x128xf32>
    %207 = arith.addf %206, %16 : vector<8x128xf32>
    %208 = vector.extract_strided_slice %207 {offsets = [0, 0], sizes = [8, 32], strides = [1, 1]} : vector<8x128xf32> to vector<8x32xf32>
    %209 = vector.extract_strided_slice %207 {offsets = [0, 32], sizes = [8, 32], strides = [1, 1]} : vector<8x128xf32> to vector<8x32xf32>
    %210 = vector.extract_strided_slice %207 {offsets = [0, 64], sizes = [8, 32], strides = [1, 1]} : vector<8x128xf32> to vector<8x32xf32>
    %211 = vector.extract_strided_slice %207 {offsets = [0, 96], sizes = [8, 32], strides = [1, 1]} : vector<8x128xf32> to vector<8x32xf32>
    %212 = arith.mulf %209, %176 : vector<8x32xf32>
    %213 = arith.mulf %208, %210 : vector<8x32xf32>
    %214 = arith.addf %212, %213 : vector<8x32xf32>
    %215 = math.tanh %214 : vector<8x32xf32>
    %216 = arith.mulf %211, %215 : vector<8x32xf32>
    %217 = tpu.concatenate %199, %216 in 1 : vector<8x32xf32>, vector<8x32xf32> -> vector<8x64xf32>
    %c5_i32 = arith.constant 5 : i32
    %cst_37 = arith.constant dense<0.000000e+00> : vector<8x256xf32>
    %218 = tpu.matmul %217, %0, %cst_37 {dimension_numbers = #tpu.dot_dimension_numbers<[1], [0], [0], [1], [0, 0, 1, 1], [], []>} : vector<8x64xf32>, vector<64x256xf32>, vector<8x256xf32> -> vector<8x256xf32>
    %c8_i32_38 = arith.constant 8 : i32
    %219 = arith.muli %c5_i32, %c8_i32_38 : i32
    %220 = tpu.assume_multiple %219, 8 : i32
    %221 = arith.index_cast %220 : i32 to index
    %c0_39 = arith.constant 0 : index
    %222 = vector.load %arg9[%221, %c0_39] : memref<64x128xf32, #tpu.memory_space<vmem>>, vector<8x128xf32>
    %223 = vector.extract_strided_slice %218 {offsets = [0, 0], sizes = [8, 128], strides = [1, 1]} : vector<8x256xf32> to vector<8x128xf32>
    %224 = arith.addf %222, %223 : vector<8x128xf32>
    %225 = arith.mulf %224, %13 : vector<8x128xf32>
    %226 = math.tanh %225 : vector<8x128xf32>
    %227 = arith.mulf %226, %13 : vector<8x128xf32>
    %228 = arith.addf %227, %16 : vector<8x128xf32>
    %229 = vector.extract_strided_slice %228 {offsets = [0, 0], sizes = [8, 32], strides = [1, 1]} : vector<8x128xf32> to vector<8x32xf32>
    %230 = vector.extract_strided_slice %228 {offsets = [0, 32], sizes = [8, 32], strides = [1, 1]} : vector<8x128xf32> to vector<8x32xf32>
    %231 = vector.extract_strided_slice %228 {offsets = [0, 64], sizes = [8, 32], strides = [1, 1]} : vector<8x128xf32> to vector<8x32xf32>
    %232 = vector.extract_strided_slice %228 {offsets = [0, 96], sizes = [8, 32], strides = [1, 1]} : vector<8x128xf32> to vector<8x32xf32>
    %233 = arith.mulf %230, %197 : vector<8x32xf32>
    %234 = arith.mulf %229, %231 : vector<8x32xf32>
    %235 = arith.addf %233, %234 : vector<8x32xf32>
    %236 = math.tanh %235 : vector<8x32xf32>
    %237 = arith.mulf %232, %236 : vector<8x32xf32>
    %cst_40 = arith.constant dense<0.000000e+00> : vector<8x128xf32>
    %238 = tpu.matmul %237, %1, %cst_40 {dimension_numbers = #tpu.dot_dimension_numbers<[1], [0], [0], [1], [0, 0, 1, 1], [], []>} : vector<8x32xf32>, vector<32x128xf32>, vector<8x128xf32> -> vector<8x128xf32>
    %239 = vector.extract_strided_slice %218 {offsets = [0, 128], sizes = [8, 128], strides = [1, 1]} : vector<8x256xf32> to vector<8x128xf32>
    %240 = arith.addf %238, %239 : vector<8x128xf32>
    %241 = arith.addf %240, %4 : vector<8x128xf32>
    %242 = arith.mulf %241, %13 : vector<8x128xf32>
    %243 = math.tanh %242 : vector<8x128xf32>
    %244 = arith.mulf %243, %13 : vector<8x128xf32>
    %245 = arith.addf %244, %16 : vector<8x128xf32>
    %246 = vector.extract_strided_slice %245 {offsets = [0, 0], sizes = [8, 32], strides = [1, 1]} : vector<8x128xf32> to vector<8x32xf32>
    %247 = vector.extract_strided_slice %245 {offsets = [0, 32], sizes = [8, 32], strides = [1, 1]} : vector<8x128xf32> to vector<8x32xf32>
    %248 = vector.extract_strided_slice %245 {offsets = [0, 64], sizes = [8, 32], strides = [1, 1]} : vector<8x128xf32> to vector<8x32xf32>
    %249 = vector.extract_strided_slice %245 {offsets = [0, 96], sizes = [8, 32], strides = [1, 1]} : vector<8x128xf32> to vector<8x32xf32>
    %250 = arith.mulf %247, %214 : vector<8x32xf32>
    %251 = arith.mulf %246, %248 : vector<8x32xf32>
    %252 = arith.addf %250, %251 : vector<8x32xf32>
    %253 = math.tanh %252 : vector<8x32xf32>
    %254 = arith.mulf %249, %253 : vector<8x32xf32>
    %255 = tpu.concatenate %237, %254 in 1 : vector<8x32xf32>, vector<8x32xf32> -> vector<8x64xf32>
    %c6_i32 = arith.constant 6 : i32
    %cst_41 = arith.constant dense<0.000000e+00> : vector<8x256xf32>
    %256 = tpu.matmul %255, %0, %cst_41 {dimension_numbers = #tpu.dot_dimension_numbers<[1], [0], [0], [1], [0, 0, 1, 1], [], []>} : vector<8x64xf32>, vector<64x256xf32>, vector<8x256xf32> -> vector<8x256xf32>
    %c8_i32_42 = arith.constant 8 : i32
    %257 = arith.muli %c6_i32, %c8_i32_42 : i32
    %258 = tpu.assume_multiple %257, 8 : i32
    %259 = arith.index_cast %258 : i32 to index
    %c0_43 = arith.constant 0 : index
    %260 = vector.load %arg9[%259, %c0_43] : memref<64x128xf32, #tpu.memory_space<vmem>>, vector<8x128xf32>
    %261 = vector.extract_strided_slice %256 {offsets = [0, 0], sizes = [8, 128], strides = [1, 1]} : vector<8x256xf32> to vector<8x128xf32>
    %262 = arith.addf %260, %261 : vector<8x128xf32>
    %263 = arith.mulf %262, %13 : vector<8x128xf32>
    %264 = math.tanh %263 : vector<8x128xf32>
    %265 = arith.mulf %264, %13 : vector<8x128xf32>
    %266 = arith.addf %265, %16 : vector<8x128xf32>
    %267 = vector.extract_strided_slice %266 {offsets = [0, 0], sizes = [8, 32], strides = [1, 1]} : vector<8x128xf32> to vector<8x32xf32>
    %268 = vector.extract_strided_slice %266 {offsets = [0, 32], sizes = [8, 32], strides = [1, 1]} : vector<8x128xf32> to vector<8x32xf32>
    %269 = vector.extract_strided_slice %266 {offsets = [0, 64], sizes = [8, 32], strides = [1, 1]} : vector<8x128xf32> to vector<8x32xf32>
    %270 = vector.extract_strided_slice %266 {offsets = [0, 96], sizes = [8, 32], strides = [1, 1]} : vector<8x128xf32> to vector<8x32xf32>
    %271 = arith.mulf %268, %235 : vector<8x32xf32>
    %272 = arith.mulf %267, %269 : vector<8x32xf32>
    %273 = arith.addf %271, %272 : vector<8x32xf32>
    %274 = math.tanh %273 : vector<8x32xf32>
    %275 = arith.mulf %270, %274 : vector<8x32xf32>
    %cst_44 = arith.constant dense<0.000000e+00> : vector<8x128xf32>
    %276 = tpu.matmul %275, %1, %cst_44 {dimension_numbers = #tpu.dot_dimension_numbers<[1], [0], [0], [1], [0, 0, 1, 1], [], []>} : vector<8x32xf32>, vector<32x128xf32>, vector<8x128xf32> -> vector<8x128xf32>
    %277 = vector.extract_strided_slice %256 {offsets = [0, 128], sizes = [8, 128], strides = [1, 1]} : vector<8x256xf32> to vector<8x128xf32>
    %278 = arith.addf %276, %277 : vector<8x128xf32>
    %279 = arith.addf %278, %4 : vector<8x128xf32>
    %280 = arith.mulf %279, %13 : vector<8x128xf32>
    %281 = math.tanh %280 : vector<8x128xf32>
    %282 = arith.mulf %281, %13 : vector<8x128xf32>
    %283 = arith.addf %282, %16 : vector<8x128xf32>
    %284 = vector.extract_strided_slice %283 {offsets = [0, 0], sizes = [8, 32], strides = [1, 1]} : vector<8x128xf32> to vector<8x32xf32>
    %285 = vector.extract_strided_slice %283 {offsets = [0, 32], sizes = [8, 32], strides = [1, 1]} : vector<8x128xf32> to vector<8x32xf32>
    %286 = vector.extract_strided_slice %283 {offsets = [0, 64], sizes = [8, 32], strides = [1, 1]} : vector<8x128xf32> to vector<8x32xf32>
    %287 = vector.extract_strided_slice %283 {offsets = [0, 96], sizes = [8, 32], strides = [1, 1]} : vector<8x128xf32> to vector<8x32xf32>
    %288 = arith.mulf %285, %252 : vector<8x32xf32>
    %289 = arith.mulf %284, %286 : vector<8x32xf32>
    %290 = arith.addf %288, %289 : vector<8x32xf32>
    %291 = math.tanh %290 : vector<8x32xf32>
    %292 = arith.mulf %287, %291 : vector<8x32xf32>
    %293 = tpu.concatenate %275, %292 in 1 : vector<8x32xf32>, vector<8x32xf32> -> vector<8x64xf32>
    %c7_i32 = arith.constant 7 : i32
    %cst_45 = arith.constant dense<0.000000e+00> : vector<8x256xf32>
    %294 = tpu.matmul %293, %0, %cst_45 {dimension_numbers = #tpu.dot_dimension_numbers<[1], [0], [0], [1], [0, 0, 1, 1], [], []>} : vector<8x64xf32>, vector<64x256xf32>, vector<8x256xf32> -> vector<8x256xf32>
    %c8_i32_46 = arith.constant 8 : i32
    %295 = arith.muli %c7_i32, %c8_i32_46 : i32
    %296 = tpu.assume_multiple %295, 8 : i32
    %297 = arith.index_cast %296 : i32 to index
    %c0_47 = arith.constant 0 : index
    %298 = vector.load %arg9[%297, %c0_47] : memref<64x128xf32, #tpu.memory_space<vmem>>, vector<8x128xf32>
    %299 = vector.extract_strided_slice %294 {offsets = [0, 0], sizes = [8, 128], strides = [1, 1]} : vector<8x256xf32> to vector<8x128xf32>
    %300 = arith.addf %298, %299 : vector<8x128xf32>
    %301 = arith.mulf %300, %13 : vector<8x128xf32>
    %302 = math.tanh %301 : vector<8x128xf32>
    %303 = arith.mulf %302, %13 : vector<8x128xf32>
    %304 = arith.addf %303, %16 : vector<8x128xf32>
    %305 = vector.extract_strided_slice %304 {offsets = [0, 0], sizes = [8, 32], strides = [1, 1]} : vector<8x128xf32> to vector<8x32xf32>
    %306 = vector.extract_strided_slice %304 {offsets = [0, 32], sizes = [8, 32], strides = [1, 1]} : vector<8x128xf32> to vector<8x32xf32>
    %307 = vector.extract_strided_slice %304 {offsets = [0, 64], sizes = [8, 32], strides = [1, 1]} : vector<8x128xf32> to vector<8x32xf32>
    %308 = vector.extract_strided_slice %304 {offsets = [0, 96], sizes = [8, 32], strides = [1, 1]} : vector<8x128xf32> to vector<8x32xf32>
    %309 = arith.mulf %306, %273 : vector<8x32xf32>
    %310 = arith.mulf %305, %307 : vector<8x32xf32>
    %311 = arith.addf %309, %310 : vector<8x32xf32>
    %312 = math.tanh %311 : vector<8x32xf32>
    %313 = arith.mulf %308, %312 : vector<8x32xf32>
    %cst_48 = arith.constant dense<0.000000e+00> : vector<8x128xf32>
    %314 = tpu.matmul %313, %1, %cst_48 {dimension_numbers = #tpu.dot_dimension_numbers<[1], [0], [0], [1], [0, 0, 1, 1], [], []>} : vector<8x32xf32>, vector<32x128xf32>, vector<8x128xf32> -> vector<8x128xf32>
    %315 = vector.extract_strided_slice %294 {offsets = [0, 128], sizes = [8, 128], strides = [1, 1]} : vector<8x256xf32> to vector<8x128xf32>
    %316 = arith.addf %314, %315 : vector<8x128xf32>
    %317 = arith.addf %316, %4 : vector<8x128xf32>
    %318 = arith.mulf %317, %13 : vector<8x128xf32>
    %319 = math.tanh %318 : vector<8x128xf32>
    %320 = arith.mulf %319, %13 : vector<8x128xf32>
    %321 = arith.addf %320, %16 : vector<8x128xf32>
    %322 = vector.extract_strided_slice %321 {offsets = [0, 0], sizes = [8, 32], strides = [1, 1]} : vector<8x128xf32> to vector<8x32xf32>
    %323 = vector.extract_strided_slice %321 {offsets = [0, 32], sizes = [8, 32], strides = [1, 1]} : vector<8x128xf32> to vector<8x32xf32>
    %324 = vector.extract_strided_slice %321 {offsets = [0, 64], sizes = [8, 32], strides = [1, 1]} : vector<8x128xf32> to vector<8x32xf32>
    %325 = vector.extract_strided_slice %321 {offsets = [0, 96], sizes = [8, 32], strides = [1, 1]} : vector<8x128xf32> to vector<8x32xf32>
    %326 = arith.mulf %323, %290 : vector<8x32xf32>
    %327 = arith.mulf %322, %324 : vector<8x32xf32>
    %328 = arith.addf %326, %327 : vector<8x32xf32>
    %329 = math.tanh %328 : vector<8x32xf32>
    %330 = arith.mulf %325, %329 : vector<8x32xf32>
    %331 = tpu.concatenate %313, %330 in 1 : vector<8x32xf32>, vector<8x32xf32> -> vector<8x64xf32>
    %c8_i32_49 = arith.constant 8 : i32
    %332 = vector.extract_strided_slice %331 {offsets = [0, 32], sizes = [8, 32], strides = [1, 1]} : vector<8x64xf32> to vector<8x32xf32>
    %c0_50 = arith.constant 0 : index
    %c0_51 = arith.constant 0 : index
    %333 = vector.load %arg6[%c0_50, %c0_51] : memref<32x128xf32, #tpu.memory_space<vmem>>, vector<32x128xf32>
    %cst_52 = arith.constant dense<0.000000e+00> : vector<8x128xf32>
    %334 = tpu.matmul %332, %333, %cst_52 {dimension_numbers = #tpu.dot_dimension_numbers<[1], [0], [0], [1], [0, 0, 1, 1], [], []>} : vector<8x32xf32>, vector<32x128xf32>, vector<8x128xf32> -> vector<8x128xf32>
    %c0_53 = arith.constant 0 : index
    %c0_54 = arith.constant 0 : index
    %335 = vector.load %arg7[%c0_53, %c0_54] : memref<1x128xf32, #tpu.memory_space<vmem>>, vector<1x128xf32>
    %336 = vector.broadcast %335 : vector<1x128xf32> to vector<8x128xf32>
    %337 = arith.addf %334, %336 : vector<8x128xf32>
    %c0_55 = arith.constant 0 : index
    %c0_56 = arith.constant 0 : index
    %338 = vector.load %arg8[%c0_55, %c0_56] : memref<8x128xf32, #tpu.memory_space<vmem>>, vector<8x128xf32>
    tpu.vector_store %arg8[%c0_55, %c0_56], %337 {strides = array<i32>} : memref<8x128xf32, #tpu.memory_space<vmem>>, vector<8x128xf32>,
    return
  }
}

</mosaic_0001>

<llo_original>
// kernel: tpu_custom_call.1
$region0: #{tpu_custom_call.1}
  #allocation0 [shape = 'u32[]', space=smem, size = 0x4, offset = 0x4, fixed_abs, tag = 'smem constant byte address 0x4 - core index']
  #allocation1 [shape = 'u32[144,128]{1,0:T(1,128)}', space=vmem, size = 0x12000, scoped, tag = 'internal scratch']
  #allocation2 [shape = 'f32[64,128]{1,0:T(8,128)}', space=vmem, size = 0x8000, scoped, tag = 'scratch operand']
  %s0 = inlined_call_operand.vmem [shape: f32[64,1], index: 0, kind: input, shape index: {}]
  %s1 = inlined_call_operand.vmem [shape: f32[1,128], index: 1, kind: input, shape index: {}]
  %s2 = inlined_call_operand.hbm [shape: f32[64,256], index: 2, kind: input, shape index: {}]
  %s3 = inlined_call_operand.vmem [shape: f32[1,128], index: 3, kind: input, shape index: {}]
  %s4 = inlined_call_operand.vmem [shape: f32[32,128], index: 4, kind: input, shape index: {}]
  %s5 = inlined_call_operand.vmem [shape: f32[1,128], index: 5, kind: input, shape index: {}]
  %s6 = inlined_call_operand.vmem [shape: f32[32,128], index: 6, kind: input, shape index: {}]
  %s7 = inlined_call_operand.vmem [shape: f32[1,128], index: 7, kind: input, shape index: {}]
  %s8 = inlined_call_operand.hbm [shape: f32[8,128], index: 8, kind: output, shape index: {}]
  %s9 = sld [smem:[#allocation0]]
  $region46: #{tpu_custom_call.1} parent=0
    _
  %s11 = ssub.s32 1, %s9
  %s12 = scalar_select 0, %s11, %s9
  $region1: #{tpu_custom_call.1} parent=0
    #allocation3 [shape = 'u8[65536]{0}', space=vmem, size = 0x10000, scoped, tag = 'input window, operand 2, single buffered']
    #allocation4 [shape = 's32[1]{0}', space=sflag, size = 0x4, scoped, tag = 'scoped memory for tpu_custom_call.1']
    #allocation5 [shape = 's32[1]{0}', space=sflag, size = 0x4, scoped, tag = 'scoped memory for tpu_custom_call.1']
    #allocation6 [shape = 'u8[4096]{0}', space=vmem, size = 0x1000, scoped, tag = 'output window, operand 0, single buffered']
    %13 = vsyncpa [#allocation4], 0
    %14 = vsyncpa [#allocation5], 0
    // Predicated region
    $region2: #{tpu_custom_call.1} parent=1 // pred_check
      _
    $region3: #{tpu_custom_call.1} parent=1 // pred_check_branch
      %16 = sbr.rel (0) target = $region5
    $region4: #{tpu_custom_call.1} parent=1 // pred_region
      _
    $region5: #{tpu_custom_call.1} parent=1 // pred_fallthru
      _
    // Predicated region
    $region6: #{tpu_custom_call.1} parent=1 // pred_check
      _
    $region7: #{tpu_custom_call.1} parent=1 // pred_check_branch
      %18 = sbr.rel (0) target = $region9
    $region8: #{tpu_custom_call.1} parent=1 // pred_region
      _
    $region9: #{tpu_custom_call.1} parent=1 // pred_fallthru
      _
    // Predicated region
    $region10: #{tpu_custom_call.1} parent=1 // pred_check
      _
    $region11: #{tpu_custom_call.1} parent=1 // pred_check_branch
      %20 = sbr.rel (0) target = $region13
    $region12: #{tpu_custom_call.1} parent=1 // pred_region
      %s22 = ssub.s32 2048, 2048
      %23 = vsyncadd [#allocation4], %s22
      %s24 = sshll.u32 [#allocation3], 4
      %s25 = int_to_ptr.vmem [resolvable:$true] %s24
      %30 = dma.hbm_to_vmem [thread:$0]  %s2, 2048, %s25, [#allocation4], 256, 256, 16
    $region13: #{tpu_custom_call.1} parent=1 // pred_fallthru
      _
    // Predicated region
    $region14: #{tpu_custom_call.1} parent=1 // pred_check
      _
    $region15: #{tpu_custom_call.1} parent=1 // pred_check_branch
      %32 = sbr.rel (0) target = $region17
    $region16: #{tpu_custom_call.1} parent=1 // pred_region
      _
    $region17: #{tpu_custom_call.1} parent=1 // pred_fallthru
      _
    // Predicated region
    $region18: #{tpu_custom_call.1} parent=1 // pred_check
      _
    $region19: #{tpu_custom_call.1} parent=1 // pred_check_branch
      %34 = sbr.rel (0) target = $region21
    $region20: #{tpu_custom_call.1} parent=1 // pred_region
      _
    $region21: #{tpu_custom_call.1} parent=1 // pred_fallthru
      _
    // Predicated region
    $region22: #{tpu_custom_call.1} parent=1 // pred_check
      _
    $region23: #{tpu_custom_call.1} parent=1 // pred_check_branch
      %36 = sbr.rel (0) target = $region25
    $region24: #{tpu_custom_call.1} parent=1 // pred_region
      _
    $region25: #{tpu_custom_call.1} parent=1 // pred_fallthru
      _
    // Predicated region
    $region26: #{tpu_custom_call.1} parent=1 // pred_check
      _
    $region27: #{tpu_custom_call.1} parent=1 // pred_check_branch
      %38 = sbr.rel (0) target = $region29
    $region28: #{tpu_custom_call.1} parent=1 // pred_region
      _
    $region29: #{tpu_custom_call.1} parent=1 // pred_fallthru
      _
    // Predicated region
    $region30: #{tpu_custom_call.1} parent=1 // pred_check
      _
    $region31: #{tpu_custom_call.1} parent=1 // pred_check_branch
      %40 = sbr.rel (0) target = $region33
    $region32: #{tpu_custom_call.1} parent=1 // pred_region
      _
    $region33: #{tpu_custom_call.1} parent=1 // pred_fallthru
      _
    // Predicated region
    $region34: #{tpu_custom_call.1} parent=1 // pred_check
      _
    $region35: #{tpu_custom_call.1} parent=1 // pred_check_branch
      %42 = sbr.rel (0) target = $region37
    $region36: #{tpu_custom_call.1} parent=1 // pred_region
      %43 = dma.done [#allocation4], 2048
    $region37: #{tpu_custom_call.1} parent=1 // pred_fallthru
      _
    %v44 = vld [vmem:[#allocation3] sm:$0xff]
    %v45 = vld [vmem:[#allocation3 + $0x8] sm:$0xff]
    %v46 = vld [vmem:[#allocation3 + $0x10] sm:$0xff]
    %v47 = vld [vmem:[#allocation3 + $0x18] sm:$0xff]
    %v48 = vld [vmem:[#allocation3 + $0x20] sm:$0xff]
    %v49 = vld [vmem:[#allocation3 + $0x28] sm:$0xff]
    %v50 = vld [vmem:[#allocation3 + $0x30] sm:$0xff]
    %v51 = vld [vmem:[#allocation3 + $0x38] sm:$0xff]
    %v52 = vld [vmem:[#allocation3 + $0x40] sm:$0xff]
    %v53 = vld [vmem:[#allocation3 + $0x48] sm:$0xff]
    %v54 = vld [vmem:[#allocation3 + $0x50] sm:$0xff]
    %v55 = vld [vmem:[#allocation3 + $0x58] sm:$0xff]
    %v56 = vld [vmem:[#allocation3 + $0x60] sm:$0xff]
    %v57 = vld [vmem:[#allocation3 + $0x68] sm:$0xff]
    %v58 = vld [vmem:[#allocation3 + $0x70] sm:$0xff]
    %v59 = vld [vmem:[#allocation3 + $0x78] sm:$0xff]
    %v60 = vld [vmem:[%s4] sm:$0xff]
    %v61 = vld [vmem:[%s4 + $0x8] sm:$0xff]
    %v62 = vld [vmem:[%s4 + $0x10] sm:$0xff]
    %v63 = vld [vmem:[%s4 + $0x18] sm:$0xff]
    %v64 = vld [vmem:[%s5] sm:$0x1]
    %v66 = vlaneseq
    %v67 = vshrl.u32 %v66, 7
    %v68 = vsub.s32 0, %v67
    %v69 = vrot.slane %v64, %v68
    %v71 = vlaneseq
    %v72 = vand.u32 %v71, 127
    %vm73 = vcmp.ge.s32.totalorder %v72, 64
    %vm74 = vcmp.lt.s32.totalorder %v72, 96
    %vm75 = vmand %vm73, %vm74
    %v76 = vsel %vm75, 1.0, 0.5
    %v77 = vsel %vm75, 0.0, 0.5
    %v78 = vld [vmem:[%s0] sm:$0xff]
    %v79 = vld [vmem:[%s0 + $0x8] sm:$0xff]
    %v80 = vld [vmem:[%s0 + $0x10] sm:$0xff]
    %v81 = vld [vmem:[%s0 + $0x18] sm:$0xff]
    %v82 = vld [vmem:[%s0 + $0x20] sm:$0xff]
    %v83 = vld [vmem:[%s0 + $0x28] sm:$0xff]
    %v84 = vld [vmem:[%s0 + $0x30] sm:$0xff]
    %v85 = vld [vmem:[%s0 + $0x38] sm:$0xff]
    %v86 = vld [vmem:[%s1] sm:$0x1]
    %88 = vset.pattern.permute.xlu0 0
    %89 = vperm.xlu0 %88, %v78
    %v90 = vpop.permute.xlu0 %89
    %93 = vset.pattern.permute.xlu0 0
    %94 = vperm.xlu0 %93, %v79
    %v95 = vpop.permute.xlu0 %94
    %98 = vset.pattern.permute.xlu0 0
    %99 = vperm.xlu0 %98, %v80
    %v100 = vpop.permute.xlu0 %99
    %103 = vset.pattern.permute.xlu0 0
    %104 = vperm.xlu0 %103, %v81
    %v105 = vpop.permute.xlu0 %104
    %108 = vset.pattern.permute.xlu0 0
    %109 = vperm.xlu0 %108, %v82
    %v110 = vpop.permute.xlu0 %109
    %113 = vset.pattern.permute.xlu0 0
    %114 = vperm.xlu0 %113, %v83
    %v115 = vpop.permute.xlu0 %114
    %118 = vset.pattern.permute.xlu0 0
    %119 = vperm.xlu0 %118, %v84
    %v120 = vpop.permute.xlu0 %119
    %123 = vset.pattern.permute.xlu0 0
    %124 = vperm.xlu0 %123, %v85
    %v125 = vpop.permute.xlu0 %124
    %v128 = vlaneseq
    %v129 = vshrl.u32 %v128, 7
    %v130 = vsub.s32 0, %v129
    %v131 = vrot.slane %v86, %v130
    %v133 = vmul.f32 %v90, %v131
    %v134 = vmul.f32 %v95, %v131
    %v135 = vmul.f32 %v100, %v131
    %v136 = vmul.f32 %v105, %v131
    %v137 = vmul.f32 %v110, %v131
    %v138 = vmul.f32 %v115, %v131
    %v139 = vmul.f32 %v120, %v131
    %v140 = vmul.f32 %v125, %v131
    %v141 = vld [vmem:[%s3] sm:$0x1]
    %v143 = vlaneseq
    %v144 = vshrl.u32 %v143, 7
    %v145 = vsub.s32 0, %v144
    %v146 = vrot.slane %v141, %v145
    %v148 = vadd.f32 %v133, %v146
    %v149 = vadd.f32 %v134, %v146
    %v150 = vadd.f32 %v135, %v146
    %v151 = vadd.f32 %v136, %v146
    %v152 = vadd.f32 %v137, %v146
    %v153 = vadd.f32 %v138, %v146
    %v154 = vadd.f32 %v139, %v146
    %v155 = vadd.f32 %v140, %v146
    %156 = vst [vmem:[#allocation2] sm:$0xff] %v148
    %157 = vst [vmem:[#allocation2 + $0x8] sm:$0xff] %v149
    %158 = vst [vmem:[#allocation2 + $0x10] sm:$0xff] %v150
    %159 = vst [vmem:[#allocation2 + $0x18] sm:$0xff] %v151
    %160 = vst [vmem:[#allocation2 + $0x20] sm:$0xff] %v152
    %161 = vst [vmem:[#allocation2 + $0x28] sm:$0xff] %v153
    %162 = vst [vmem:[#allocation2 + $0x30] sm:$0xff] %v154
    %163 = vst [vmem:[#allocation2 + $0x38] sm:$0xff] %v155
    %vm164 = vcmask 523264
    %v166 = vsel %vm164, 0.0, 0
    %168 = vmatprep.subr.mxu0 0.0
    %169 = vmatpush1.msra.mxu0 0.0
    %170 = vmatprep.subr.mxu0 0.0
    %171 = vmatpush1.msra.mxu0 0.0
    %172 = vmatprep.subr.mxu0 0.0
    %173 = vmatpush1.msra.mxu0 0.0
    %174 = vmatprep.subr.mxu0 0.0
    %175 = vmatpush1.msra.mxu0 0.0
    %176 = vmatprep.subr.mxu0 0.0
    %177 = vmatpush1.msra.mxu0 0.0
    %178 = vmatprep.subr.mxu0 0.0
    %179 = vmatpush1.msra.mxu0 0.0
    %180 = vmatprep.subr.mxu0 0.0
    %181 = vmatpush1.msra.mxu0 0.0
    %182 = vmatprep.subr.mxu0 0.0
    %183 = vmatpush1.msra.mxu0 0.0
    %184 = vmatprep.subr.mxu0 %v59
    %185 = vmatpush1.msra.mxu0 %v58
    %186 = vmatprep.subr.mxu0 %v57
    %187 = vmatpush1.msra.mxu0 %v56
    %188 = vmatprep.subr.mxu0 %v55
    %189 = vmatpush1.msra.mxu0 %v54
    %190 = vmatprep.subr.mxu0 %v53
    %191 = vmatpush1.msra.mxu0 %v52
    %192 = vmatprep.subr.mxu0 %v51
    %193 = vmatpush1.msra.mxu0 %v50
    %194 = vmatprep.subr.mxu0 %v49
    %195 = vmatpush1.msra.mxu0 %v48
    %196 = vmatprep.subr.mxu0 %v47
    %197 = vmatpush1.msra.mxu0 %v46
    %198 = vmatprep.subr.mxu0 %v45
    %199 = vmatpush1.msra.mxu0 %v44
    %200 = vmatprep.subr.mxu0 0.0
    %201 = vmatpush2.msra.mxu0 0.0
    %202 = vmatprep.subr.mxu0 0.0
    %203 = vmatpush2.msra.mxu0 0.0
    %204 = vmatprep.subr.mxu0 0.0
    %205 = vmatpush2.msra.mxu0 0.0
    %206 = vmatprep.subr.mxu0 0.0
    %207 = vmatpush2.msra.mxu0 0.0
    %208 = vmatprep.subr.mxu0 0.0
    %209 = vmatpush2.msra.mxu0 0.0
    %210 = vmatprep.subr.mxu0 0.0
    %211 = vmatpush2.msra.mxu0 0.0
    %212 = vmatprep.subr.mxu0 0.0
    %213 = vmatpush2.msra.mxu0 0.0
    %214 = vmatprep.subr.mxu0 0.0
    %215 = vmatpush2.msra.mxu0 0.0
    %216 = vmatprep.subr.mxu0 0.0
    %217 = vmatpush2.msra.mxu0 0.0
    %218 = vmatprep.subr.mxu0 0.0
    %219 = vmatpush2.msra.mxu0 0.0
    %220 = vmatprep.subr.mxu0 0.0
    %221 = vmatpush2.msra.mxu0 0.0
    %222 = vmatprep.subr.mxu0 0.0
    %223 = vmatpush2.msra.mxu0 0.0
    %224 = vmatprep.subr.mxu0 0.0
    %225 = vmatpush2.msra.mxu0 0.0
    %226 = vmatprep.subr.mxu0 0.0
    %227 = vmatpush2.msra.mxu0 0.0
    %228 = vmatprep.subr.mxu0 0.0
    %229 = vmatpush2.msra.mxu0 0.0
    %230 = vmatprep.subr.mxu0 0.0
    %231 = vmatpush2.msra.mxu0 0.0
    %232 = vmatprep.mubr.f32.mxu0 0.0
    %233 = vmatmul.mubr.f32.gmra.mxu0 %v166
    %v234 = vpop.f32.mrf.mxu0
    %v235 = vadd.f32 0.0, %v234
    %v236 = vpop.f32.mrf.mxu0
    %v237 = vadd.f32 0.0, %v236
    %238 = vdwg.mxu0
    %v239 = vld [vmem:[#allocation2] sm:$0xff]
    %v240 = vadd.f32 %v239, %v235
    %v241 = vmul.f32 %v240, %v76
    %v242 = vtanh.pop %v241
    %v243 = vmul.f32 %v242, %v76
    %v244 = vadd.f32 %v243, %v77
    %v245 = vmul.f32 %v244, 0.0
    %247 = vrot.lane.b32.xlu0 %v244, 64
    %v248 = vpop.permute.xlu0 %247
    %v250 = vmul.f32 %v244, %v248
    %252 = vrot.lane.b32.xlu0 %v250, 32
    %v253 = vpop.permute.xlu0 %252
    %v255 = vadd.f32 %v245, %v253
    %v256 = vtanh.pop %v255
    %258 = vrot.lane.b32.xlu0 %v256, 64
    %v259 = vpop.permute.xlu0 %258
    %v261 = vmul.f32 %v244, %v259
    %263 = vrot.lane.b32.xlu0 %v261, 32
    %v264 = vpop.permute.xlu0 %263
    %vm265 = vcmask 261120
    %v266 = vsel %vm265, %v264, 0
    %268 = vmatprep.subr.mxu0 0.0
    %269 = vmatpush1.msra.mxu0 0.0
    %270 = vmatprep.subr.mxu0 0.0
    %271 = vmatpush1.msra.mxu0 0.0
    %272 = vmatprep.subr.mxu0 0.0
    %273 = vmatpush1.msra.mxu0 0.0
    %274 = vmatprep.subr.mxu0 0.0
    %275 = vmatpush1.msra.mxu0 0.0
    %276 = vmatprep.subr.mxu0 0.0
    %277 = vmatpush1.msra.mxu0 0.0
    %278 = vmatprep.subr.mxu0 0.0
    %279 = vmatpush1.msra.mxu0 0.0
    %280 = vmatprep.subr.mxu0 0.0
    %281 = vmatpush1.msra.mxu0 0.0
    %282 = vmatprep.subr.mxu0 0.0
    %283 = vmatpush1.msra.mxu0 0.0
    %284 = vmatprep.subr.mxu0 0.0
    %285 = vmatpush1.msra.mxu0 0.0
    %286 = vmatprep.subr.mxu0 0.0
    %287 = vmatpush1.msra.mxu0 0.0
    %288 = vmatprep.subr.mxu0 0.0
    %289 = vmatpush1.msra.mxu0 0.0
    %290 = vmatprep.subr.mxu0 0.0
    %291 = vmatpush1.msra.mxu0 0.0
    %292 = vmatprep.subr.mxu0 0.0
    %293 = vmatpush1.msra.mxu0 %v63
    %294 = vmatprep.subr.mxu0 0.0
    %295 = vmatpush1.msra.mxu0 %v62
    %296 = vmatprep.subr.mxu0 0.0
    %297 = vmatpush1.msra.mxu0 %v61
    %298 = vmatprep.subr.mxu0 0.0
    %299 = vmatpush1.msra.mxu0 %v60
    %300 = vmatprep.subr.mxu0 0.0
    %301 = vmatpush2.msra.mxu0 0.0
    %302 = vmatprep.subr.mxu0 0.0
    %303 = vmatpush2.msra.mxu0 0.0
    %304 = vmatprep.subr.mxu0 0.0
    %305 = vmatpush2.msra.mxu0 0.0
    %306 = vmatprep.subr.mxu0 0.0
    %307 = vmatpush2.msra.mxu0 0.0
    %308 = vmatprep.subr.mxu0 0.0
    %309 = vmatpush2.msra.mxu0 0.0
    %310 = vmatprep.subr.mxu0 0.0
    %311 = vmatpush2.msra.mxu0 0.0
    %312 = vmatprep.subr.mxu0 0.0
    %313 = vmatpush2.msra.mxu0 0.0
    %314 = vmatprep.subr.mxu0 0.0
    %315 = vmatpush2.msra.mxu0 0.0
    %316 = vmatprep.subr.mxu0 0.0
    %317 = vmatpush2.msra.mxu0 0.0
    %318 = vmatprep.subr.mxu0 0.0
    %319 = vmatpush2.msra.mxu0 0.0
    %320 = vmatprep.subr.mxu0 0.0
    %321 = vmatpush2.msra.mxu0 0.0
    %322 = vmatprep.subr.mxu0 0.0
    %323 = vmatpush2.msra.mxu0 0.0
    %324 = vmatprep.subr.mxu0 0.0
    %325 = vmatpush2.msra.mxu0 0.0
    %326 = vmatprep.subr.mxu0 0.0
    %327 = vmatpush2.msra.mxu0 0.0
    %328 = vmatprep.subr.mxu0 0.0
    %329 = vmatpush2.msra.mxu0 0.0
    %330 = vmatprep.subr.mxu0 0.0
    %331 = vmatpush2.msra.mxu0 0.0
    %332 = vmatprep.mubr.f32.mxu0 0.0
    %333 = vmatmul.mubr.f32.gmra.mxu0 %v266
    %v334 = vpop.f32.mrf.mxu0
    %v335 = vadd.f32 %v237, %v334
    %v336 = vpop.f32.mrf.mxu0
    %337 = vdwg.mxu0
    %v338 = vadd.f32 %v335, %v69
    %v339 = vmul.f32 %v338, %v76
    %v340 = vtanh.pop %v339
    %v341 = vmul.f32 %v340, %v76
    %v342 = vadd.f32 %v341, %v77
    %v343 = vmul.f32 %v342, 0.0
    %345 = vrot.lane.b32.xlu0 %v342, 64
    %v346 = vpop.permute.xlu0 %345
    %v348 = vmul.f32 %v342, %v346
    %350 = vrot.lane.b32.xlu0 %v348, 32
    %v351 = vpop.permute.xlu0 %350
    %v353 = vadd.f32 %v343, %v351
    %v354 = vtanh.pop %v353
    %356 = vrot.lane.b32.xlu0 %v354, 64
    %v357 = vpop.permute.xlu0 %356
    %v359 = vmul.f32 %v342, %v357
    %362 = vrot.lane.b32.xlu0 %v359, 64
    %v363 = vpop.permute.xlu0 %362
    %v365 = vsel %vm265, %v264, %v363
    %v367 = vsel %vm164, %v365, 0
    %369 = vmatprep.subr.mxu0 0.0
    %370 = vmatpush1.msra.mxu0 0.0
    %371 = vmatprep.subr.mxu0 0.0
    %372 = vmatpush1.msra.mxu0 0.0
    %373 = vmatprep.subr.mxu0 0.0
    %374 = vmatpush1.msra.mxu0 0.0
    %375 = vmatprep.subr.mxu0 0.0
    %376 = vmatpush1.msra.mxu0 0.0
    %377 = vmatprep.subr.mxu0 0.0
    %378 = vmatpush1.msra.mxu0 0.0
    %379 = vmatprep.subr.mxu0 0.0
    %380 = vmatpush1.msra.mxu0 0.0
    %381 = vmatprep.subr.mxu0 0.0
    %382 = vmatpush1.msra.mxu0 0.0
    %383 = vmatprep.subr.mxu0 0.0
    %384 = vmatpush1.msra.mxu0 0.0
    %385 = vmatprep.subr.mxu0 %v59
    %386 = vmatpush1.msra.mxu0 %v58
    %387 = vmatprep.subr.mxu0 %v57
    %388 = vmatpush1.msra.mxu0 %v56
    %389 = vmatprep.subr.mxu0 %v55
    %390 = vmatpush1.msra.mxu0 %v54
    %391 = vmatprep.subr.mxu0 %v53
    %392 = vmatpush1.msra.mxu0 %v52
    %393 = vmatprep.subr.mxu0 %v51
    %394 = vmatpush1.msra.mxu0 %v50
    %395 = vmatprep.subr.mxu0 %v49
    %396 = vmatpush1.msra.mxu0 %v48
    %397 = vmatprep.subr.mxu0 %v47
    %398 = vmatpush1.msra.mxu0 %v46
    %399 = vmatprep.subr.mxu0 %v45
    %400 = vmatpush1.msra.mxu0 %v44
    %401 = vmatprep.subr.mxu0 0.0
    %402 = vmatpush2.msra.mxu0 0.0
    %403 = vmatprep.subr.mxu0 0.0
    %404 = vmatpush2.msra.mxu0 0.0
    %405 = vmatprep.subr.mxu0 0.0
    %406 = vmatpush2.msra.mxu0 0.0
    %407 = vmatprep.subr.mxu0 0.0
    %408 = vmatpush2.msra.mxu0 0.0
    %409 = vmatprep.subr.mxu0 0.0
    %410 = vmatpush2.msra.mxu0 0.0
    %411 = vmatprep.subr.mxu0 0.0
    %412 = vmatpush2.msra.mxu0 0.0
    %413 = vmatprep.subr.mxu0 0.0
    %414 = vmatpush2.msra.mxu0 0.0
    %415 = vmatprep.subr.mxu0 0.0
    %416 = vmatpush2.msra.mxu0 0.0
    %417 = vmatprep.subr.mxu0 0.0
    %418 = vmatpush2.msra.mxu0 0.0
    %419 = vmatprep.subr.mxu0 0.0
    %420 = vmatpush2.msra.mxu0 0.0
    %421 = vmatprep.subr.mxu0 0.0
    %422 = vmatpush2.msra.mxu0 0.0
    %423 = vmatprep.subr.mxu0 0.0
    %424 = vmatpush2.msra.mxu0 0.0
    %425 = vmatprep.subr.mxu0 0.0
    %426 = vmatpush2.msra.mxu0 0.0
    %427 = vmatprep.subr.mxu0 0.0
    %428 = vmatpush2.msra.mxu0 0.0
    %429 = vmatprep.subr.mxu0 0.0
    %430 = vmatpush2.msra.mxu0 0.0
    %431 = vmatprep.subr.mxu0 0.0
    %432 = vmatpush2.msra.mxu0 0.0
    %433 = vmatprep.mubr.f32.mxu0 0.0
    %434 = vmatmul.mubr.f32.gmra.mxu0 %v367
    %v435 = vpop.f32.mrf.mxu0
    %v436 = vadd.f32 0.0, %v435
    %v437 = vpop.f32.mrf.mxu0
    %v438 = vadd.f32 0.0, %v437
    %439 = vdwg.mxu0
    %s440 = scalar_lea.vmem [#allocation2], 8
    %v441 = vld [vmem:[%s440] sm:$0xff]
    %v442 = vadd.f32 %v441, %v436
    %v443 = vmul.f32 %v442, %v76
    %v444 = vtanh.pop %v443
    %v445 = vmul.f32 %v444, %v76
    %v446 = vadd.f32 %v445, %v77
    %v447 = vmul.f32 %v446, %v255
    %449 = vrot.lane.b32.xlu0 %v446, 64
    %v450 = vpop.permute.xlu0 %449
    %v452 = vmul.f32 %v446, %v450
    %454 = vrot.lane.b32.xlu0 %v452, 32
    %v455 = vpop.permute.xlu0 %454
    %v457 = vadd.f32 %v447, %v455
    %v458 = vtanh.pop %v457
    %460 = vrot.lane.b32.xlu0 %v458, 64
    %v461 = vpop.permute.xlu0 %460
    %v463 = vmul.f32 %v446, %v461
    %465 = vrot.lane.b32.xlu0 %v463, 32
    %v466 = vpop.permute.xlu0 %465
    %v467 = vsel %vm265, %v466, 0
    %469 = vmatprep.subr.mxu0 0.0
    %470 = vmatpush1.msra.mxu0 0.0
    %471 = vmatprep.subr.mxu0 0.0
    %472 = vmatpush1.msra.mxu0 0.0
    %473 = vmatprep.subr.mxu0 0.0
    %474 = vmatpush1.msra.mxu0 0.0
    %475 = vmatprep.subr.mxu0 0.0
    %476 = vmatpush1.msra.mxu0 0.0
    %477 = vmatprep.subr.mxu0 0.0
    %478 = vmatpush1.msra.mxu0 0.0
    %479 = vmatprep.subr.mxu0 0.0
    %480 = vmatpush1.msra.mxu0 0.0
    %481 = vmatprep.subr.mxu0 0.0
    %482 = vmatpush1.msra.mxu0 0.0
    %483 = vmatprep.subr.mxu0 0.0
    %484 = vmatpush1.msra.mxu0 0.0
    %485 = vmatprep.subr.mxu0 0.0
    %486 = vmatpush1.msra.mxu0 0.0
    %487 = vmatprep.subr.mxu0 0.0
    %488 = vmatpush1.msra.mxu0 0.0
    %489 = vmatprep.subr.mxu0 0.0
    %490 = vmatpush1.msra.mxu0 0.0
    %491 = vmatprep.subr.mxu0 0.0
    %492 = vmatpush1.msra.mxu0 0.0
    %493 = vmatprep.subr.mxu0 0.0
    %494 = vmatpush1.msra.mxu0 %v63
    %495 = vmatprep.subr.mxu0 0.0
    %496 = vmatpush1.msra.mxu0 %v62
    %497 = vmatprep.subr.mxu0 0.0
    %498 = vmatpush1.msra.mxu0 %v61
    %499 = vmatprep.subr.mxu0 0.0
    %500 = vmatpush1.msra.mxu0 %v60
    %501 = vmatprep.subr.mxu0 0.0
    %502 = vmatpush2.msra.mxu0 0.0
    %503 = vmatprep.subr.mxu0 0.0
    %504 = vmatpush2.msra.mxu0 0.0
    %505 = vmatprep.subr.mxu0 0.0
    %506 = vmatpush2.msra.mxu0 0.0
    %507 = vmatprep.subr.mxu0 0.0
    %508 = vmatpush2.msra.mxu0 0.0
    %509 = vmatprep.subr.mxu0 0.0
    %510 = vmatpush2.msra.mxu0 0.0
    %511 = vmatprep.subr.mxu0 0.0
    %512 = vmatpush2.msra.mxu0 0.0
    %513 = vmatprep.subr.mxu0 0.0
    %514 = vmatpush2.msra.mxu0 0.0
    %515 = vmatprep.subr.mxu0 0.0
    %516 = vmatpush2.msra.mxu0 0.0
    %517 = vmatprep.subr.mxu0 0.0
    %518 = vmatpush2.msra.mxu0 0.0
    %519 = vmatprep.subr.mxu0 0.0
    %520 = vmatpush2.msra.mxu0 0.0
    %521 = vmatprep.subr.mxu0 0.0
    %522 = vmatpush2.msra.mxu0 0.0
    %523 = vmatprep.subr.mxu0 0.0
    %524 = vmatpush2.msra.mxu0 0.0
    %525 = vmatprep.subr.mxu0 0.0
    %526 = vmatpush2.msra.mxu0 0.0
    %527 = vmatprep.subr.mxu0 0.0
    %528 = vmatpush2.msra.mxu0 0.0
    %529 = vmatprep.subr.mxu0 0.0
    %530 = vmatpush2.msra.mxu0 0.0
    %531 = vmatprep.subr.mxu0 0.0
    %532 = vmatpush2.msra.mxu0 0.0
    %533 = vmatprep.mubr.f32.mxu0 0.0
    %534 = vmatmul.mubr.f32.gmra.mxu0 %v467
    %v535 = vpop.f32.mrf.mxu0
    %v536 = vadd.f32 %v438, %v535
    %v537 = vpop.f32.mrf.mxu0
    %538 = vdwg.mxu0
    %v539 = vadd.f32 %v536, %v69
    %v540 = vmul.f32 %v539, %v76
    %v541 = vtanh.pop %v540
    %v542 = vmul.f32 %v541, %v76
    %v543 = vadd.f32 %v542, %v77
    %v544 = vmul.f32 %v543, %v353
    %546 = vrot.lane.b32.xlu0 %v543, 64
    %v547 = vpop.permute.xlu0 %546
    %v549 = vmul.f32 %v543, %v547
    %551 = vrot.lane.b32.xlu0 %v549, 32
    %v552 = vpop.permute.xlu0 %551
    %v554 = vadd.f32 %v544, %v552
    %v555 = vtanh.pop %v554
    %557 = vrot.lane.b32.xlu0 %v555, 64
    %v558 = vpop.permute.xlu0 %557
    %v560 = vmul.f32 %v543, %v558
    %563 = vrot.lane.b32.xlu0 %v560, 64
    %v564 = vpop.permute.xlu0 %563
    %v566 = vsel %vm265, %v466, %v564
    %v568 = vsel %vm164, %v566, 0
    %570 = vmatprep.subr.mxu0 0.0
    %571 = vmatpush1.msra.mxu0 0.0
    %572 = vmatprep.subr.mxu0 0.0
    %573 = vmatpush1.msra.mxu0 0.0
    %574 = vmatprep.subr.mxu0 0.0
    %575 = vmatpush1.msra.mxu0 0.0
    %576 = vmatprep.subr.mxu0 0.0
    %577 = vmatpush1.msra.mxu0 0.0
    %578 = vmatprep.subr.mxu0 0.0
    %579 = vmatpush1.msra.mxu0 0.0
    %580 = vmatprep.subr.mxu0 0.0
    %581 = vmatpush1.msra.mxu0 0.0
    %582 = vmatprep.subr.mxu0 0.0
    %583 = vmatpush1.msra.mxu0 0.0
    %584 = vmatprep.subr.mxu0 0.0
    %585 = vmatpush1.msra.mxu0 0.0
    %586 = vmatprep.subr.mxu0 %v59
    %587 = vmatpush1.msra.mxu0 %v58
    %588 = vmatprep.subr.mxu0 %v57
    %589 = vmatpush1.msra.mxu0 %v56
    %590 = vmatprep.subr.mxu0 %v55
    %591 = vmatpush1.msra.mxu0 %v54
    %592 = vmatprep.subr.mxu0 %v53
    %593 = vmatpush1.msra.mxu0 %v52
    %594 = vmatprep.subr.mxu0 %v51
    %595 = vmatpush1.msra.mxu0 %v50
    %596 = vmatprep.subr.mxu0 %v49
    %597 = vmatpush1.msra.mxu0 %v48
    %598 = vmatprep.subr.mxu0 %v47
    %599 = vmatpush1.msra.mxu0 %v46
    %600 = vmatprep.subr.mxu0 %v45
    %601 = vmatpush1.msra.mxu0 %v44
    %602 = vmatprep.subr.mxu0 0.0
    %603 = vmatpush2.msra.mxu0 0.0
    %604 = vmatprep.subr.mxu0 0.0
    %605 = vmatpush2.msra.mxu0 0.0
    %606 = vmatprep.subr.mxu0 0.0
    %607 = vmatpush2.msra.mxu0 0.0
    %608 = vmatprep.subr.mxu0 0.0
    %609 = vmatpush2.msra.mxu0 0.0
    %610 = vmatprep.subr.mxu0 0.0
    %611 = vmatpush2.msra.mxu0 0.0
    %612 = vmatprep.subr.mxu0 0.0
    %613 = vmatpush2.msra.mxu0 0.0
    %614 = vmatprep.subr.mxu0 0.0
    %615 = vmatpush2.msra.mxu0 0.0
    %616 = vmatprep.subr.mxu0 0.0
    %617 = vmatpush2.msra.mxu0 0.0
    %618 = vmatprep.subr.mxu0 0.0
    %619 = vmatpush2.msra.mxu0 0.0
    %620 = vmatprep.subr.mxu0 0.0
    %621 = vmatpush2.msra.mxu0 0.0
    %622 = vmatprep.subr.mxu0 0.0
    %623 = vmatpush2.msra.mxu0 0.0
    %624 = vmatprep.subr.mxu0 0.0
    %625 = vmatpush2.msra.mxu0 0.0
    %626 = vmatprep.subr.mxu0 0.0
    %627 = vmatpush2.msra.mxu0 0.0
    %628 = vmatprep.subr.mxu0 0.0
    %629 = vmatpush2.msra.mxu0 0.0
    %630 = vmatprep.subr.mxu0 0.0
    %631 = vmatpush2.msra.mxu0 0.0
    %632 = vmatprep.subr.mxu0 0.0
    %633 = vmatpush2.msra.mxu0 0.0
    %634 = vmatprep.mubr.f32.mxu0 0.0
    %635 = vmatmul.mubr.f32.gmra.mxu0 %v568
    %v636 = vpop.f32.mrf.mxu0
    %v637 = vadd.f32 0.0, %v636
    %v638 = vpop.f32.mrf.mxu0
    %v639 = vadd.f32 0.0, %v638
    %640 = vdwg.mxu0
    %s641 = scalar_lea.vmem [#allocation2], 16
    %v642 = vld [vmem:[%s641] sm:$0xff]
    %v643 = vadd.f32 %v642, %v637
    %v644 = vmul.f32 %v643, %v76
    %v645 = vtanh.pop %v644
    %v646 = vmul.f32 %v645, %v76
    %v647 = vadd.f32 %v646, %v77
    %v648 = vmul.f32 %v647, %v457
    %650 = vrot.lane.b32.xlu0 %v647, 64
    %v651 = vpop.permute.xlu0 %650
    %v653 = vmul.f32 %v647, %v651
    %655 = vrot.lane.b32.xlu0 %v653, 32
    %v656 = vpop.permute.xlu0 %655
    %v658 = vadd.f32 %v648, %v656
    %v659 = vtanh.pop %v658
    %661 = vrot.lane.b32.xlu0 %v659, 64
    %v662 = vpop.permute.xlu0 %661
    %v664 = vmul.f32 %v647, %v662
    %666 = vrot.lane.b32.xlu0 %v664, 32
    %v667 = vpop.permute.xlu0 %666
    %v668 = vsel %vm265, %v667, 0
    %670 = vmatprep.subr.mxu0 0.0
    %671 = vmatpush1.msra.mxu0 0.0
    %672 = vmatprep.subr.mxu0 0.0
    %673 = vmatpush1.msra.mxu0 0.0
    %674 = vmatprep.subr.mxu0 0.0
    %675 = vmatpush1.msra.mxu0 0.0
    %676 = vmatprep.subr.mxu0 0.0
    %677 = vmatpush1.msra.mxu0 0.0
    %678 = vmatprep.subr.mxu0 0.0
    %679 = vmatpush1.msra.mxu0 0.0
    %680 = vmatprep.subr.mxu0 0.0
    %681 = vmatpush1.msra.mxu0 0.0
    %682 = vmatprep.subr.mxu0 0.0
    %683 = vmatpush1.msra.mxu0 0.0
    %684 = vmatprep.subr.mxu0 0.0
    %685 = vmatpush1.msra.mxu0 0.0
    %686 = vmatprep.subr.mxu0 0.0
    %687 = vmatpush1.msra.mxu0 0.0
    %688 = vmatprep.subr.mxu0 0.0
    %689 = vmatpush1.msra.mxu0 0.0
    %690 = vmatprep.subr.mxu0 0.0
    %691 = vmatpush1.msra.mxu0 0.0
    %692 = vmatprep.subr.mxu0 0.0
    %693 = vmatpush1.msra.mxu0 0.0
    %694 = vmatprep.subr.mxu0 0.0
    %695 = vmatpush1.msra.mxu0 %v63
    %696 = vmatprep.subr.mxu0 0.0
    %697 = vmatpush1.msra.mxu0 %v62
    %698 = vmatprep.subr.mxu0 0.0
    %699 = vmatpush1.msra.mxu0 %v61
    %700 = vmatprep.subr.mxu0 0.0
    %701 = vmatpush1.msra.mxu0 %v60
    %702 = vmatprep.subr.mxu0 0.0
    %703 = vmatpush2.msra.mxu0 0.0
    %704 = vmatprep.subr.mxu0 0.0
    %705 = vmatpush2.msra.mxu0 0.0
    %706 = vmatprep.subr.mxu0 0.0
    %707 = vmatpush2.msra.mxu0 0.0
    %708 = vmatprep.subr.mxu0 0.0
    %709 = vmatpush2.msra.mxu0 0.0
    %710 = vmatprep.subr.mxu0 0.0
    %711 = vmatpush2.msra.mxu0 0.0
    %712 = vmatprep.subr.mxu0 0.0
    %713 = vmatpush2.msra.mxu0 0.0
    %714 = vmatprep.subr.mxu0 0.0
    %715 = vmatpush2.msra.mxu0 0.0
    %716 = vmatprep.subr.mxu0 0.0
    %717 = vmatpush2.msra.mxu0 0.0
    %718 = vmatprep.subr.mxu0 0.0
    %719 = vmatpush2.msra.mxu0 0.0
    %720 = vmatprep.subr.mxu0 0.0
    %721 = vmatpush2.msra.mxu0 0.0
    %722 = vmatprep.subr.mxu0 0.0
    %723 = vmatpush2.msra.mxu0 0.0
    %724 = vmatprep.subr.mxu0 0.0
    %725 = vmatpush2.msra.mxu0 0.0
    %726 = vmatprep.subr.mxu0 0.0
    %727 = vmatpush2.msra.mxu0 0.0
    %728 = vmatprep.subr.mxu0 0.0
    %729 = vmatpush2.msra.mxu0 0.0
    %730 = vmatprep.subr.mxu0 0.0
    %731 = vmatpush2.msra.mxu0 0.0
    %732 = vmatprep.subr.mxu0 0.0
    %733 = vmatpush2.msra.mxu0 0.0
    %734 = vmatprep.mubr.f32.mxu0 0.0
    %735 = vmatmul.mubr.f32.gmra.mxu0 %v668
    %v736 = vpop.f32.mrf.mxu0
    %v737 = vadd.f32 %v639, %v736
    %v738 = vpop.f32.mrf.mxu0
    %739 = vdwg.mxu0
    %v740 = vadd.f32 %v737, %v69
    %v741 = vmul.f32 %v740, %v76
    %v742 = vtanh.pop %v741
    %v743 = vmul.f32 %v742, %v76
    %v744 = vadd.f32 %v743, %v77
    %v745 = vmul.f32 %v744, %v554
    %747 = vrot.lane.b32.xlu0 %v744, 64
    %v748 = vpop.permute.xlu0 %747
    %v750 = vmul.f32 %v744, %v748
    %752 = vrot.lane.b32.xlu0 %v750, 32
    %v753 = vpop.permute.xlu0 %752
    %v755 = vadd.f32 %v745, %v753
    %v756 = vtanh.pop %v755
    %758 = vrot.lane.b32.xlu0 %v756, 64
    %v759 = vpop.permute.xlu0 %758
    %v761 = vmul.f32 %v744, %v759
    %764 = vrot.lane.b32.xlu0 %v761, 64
    %v765 = vpop.permute.xlu0 %764
    %v767 = vsel %vm265, %v667, %v765
    %v769 = vsel %vm164, %v767, 0
    %771 = vmatprep.subr.mxu0 0.0
    %772 = vmatpush1.msra.mxu0 0.0
    %773 = vmatprep.subr.mxu0 0.0
    %774 = vmatpush1.msra.mxu0 0.0
    %775 = vmatprep.subr.mxu0 0.0
    %776 = vmatpush1.msra.mxu0 0.0
    %777 = vmatprep.subr.mxu0 0.0
    %778 = vmatpush1.msra.mxu0 0.0
    %779 = vmatprep.subr.mxu0 0.0
    %780 = vmatpush1.msra.mxu0 0.0
    %781 = vmatprep.subr.mxu0 0.0
    %782 = vmatpush1.msra.mxu0 0.0
    %783 = vmatprep.subr.mxu0 0.0
    %784 = vmatpush1.msra.mxu0 0.0
    %785 = vmatprep.subr.mxu0 0.0
    %786 = vmatpush1.msra.mxu0 0.0
    %787 = vmatprep.subr.mxu0 %v59
    %788 = vmatpush1.msra.mxu0 %v58
    %789 = vmatprep.subr.mxu0 %v57
    %790 = vmatpush1.msra.mxu0 %v56
    %791 = vmatprep.subr.mxu0 %v55
    %792 = vmatpush1.msra.mxu0 %v54
    %793 = vmatprep.subr.mxu0 %v53
    %794 = vmatpush1.msra.mxu0 %v52
    %795 = vmatprep.subr.mxu0 %v51
    %796 = vmatpush1.msra.mxu0 %v50
    %797 = vmatprep.subr.mxu0 %v49
    %798 = vmatpush1.msra.mxu0 %v48
    %799 = vmatprep.subr.mxu0 %v47
    %800 = vmatpush1.msra.mxu0 %v46
    %801 = vmatprep.subr.mxu0 %v45
    %802 = vmatpush1.msra.mxu0 %v44
    %803 = vmatprep.subr.mxu0 0.0
    %804 = vmatpush2.msra.mxu0 0.0
    %805 = vmatprep.subr.mxu0 0.0
    %806 = vmatpush2.msra.mxu0 0.0
    %807 = vmatprep.subr.mxu0 0.0
    %808 = vmatpush2.msra.mxu0 0.0
    %809 = vmatprep.subr.mxu0 0.0
    %810 = vmatpush2.msra.mxu0 0.0
    %811 = vmatprep.subr.mxu0 0.0
    %812 = vmatpush2.msra.mxu0 0.0
    %813 = vmatprep.subr.mxu0 0.0
    %814 = vmatpush2.msra.mxu0 0.0
    %815 = vmatprep.subr.mxu0 0.0
    %816 = vmatpush2.msra.mxu0 0.0
    %817 = vmatprep.subr.mxu0 0.0
    %818 = vmatpush2.msra.mxu0 0.0
    %819 = vmatprep.subr.mxu0 0.0
    %820 = vmatpush2.msra.mxu0 0.0
    %821 = vmatprep.subr.mxu0 0.0
    %822 = vmatpush2.msra.mxu0 0.0
    %823 = vmatprep.subr.mxu0 0.0
    %824 = vmatpush2.msra.mxu0 0.0
    %825 = vmatprep.subr.mxu0 0.0
    %826 = vmatpush2.msra.mxu0 0.0
    %827 = vmatprep.subr.mxu0 0.0
    %828 = vmatpush2.msra.mxu0 0.0
    %829 = vmatprep.subr.mxu0 0.0
    %830 = vmatpush2.msra.mxu0 0.0
    %831 = vmatprep.subr.mxu0 0.0
    %832 = vmatpush2.msra.mxu0 0.0
    %833 = vmatprep.subr.mxu0 0.0
    %834 = vmatpush2.msra.mxu0 0.0
    %835 = vmatprep.mubr.f32.mxu0 0.0
    %836 = vmatmul.mubr.f32.gmra.mxu0 %v769
    %v837 = vpop.f32.mrf.mxu0
    %v838 = vadd.f32 0.0, %v837
    %v839 = vpop.f32.mrf.mxu0
    %v840 = vadd.f32 0.0, %v839
    %841 = vdwg.mxu0
    %s842 = scalar_lea.vmem [#allocation2], 24
    %v843 = vld [vmem:[%s842] sm:$0xff]
    %v844 = vadd.f32 %v843, %v838
    %v845 = vmul.f32 %v844, %v76
    %v846 = vtanh.pop %v845
    %v847 = vmul.f32 %v846, %v76
    %v848 = vadd.f32 %v847, %v77
    %v849 = vmul.f32 %v848, %v658
    %851 = vrot.lane.b32.xlu0 %v848, 64
    %v852 = vpop.permute.xlu0 %851
    %v854 = vmul.f32 %v848, %v852
    %856 = vrot.lane.b32.xlu0 %v854, 32
    %v857 = vpop.permute.xlu0 %856
    %v859 = vadd.f32 %v849, %v857
    %v860 = vtanh.pop %v859
    %862 = vrot.lane.b32.xlu0 %v860, 64
    %v863 = vpop.permute.xlu0 %862
    %v865 = vmul.f32 %v848, %v863
    %867 = vrot.lane.b32.xlu0 %v865, 32
    %v868 = vpop.permute.xlu0 %867
    %v869 = vsel %vm265, %v868, 0
    %871 = vmatprep.subr.mxu0 0.0
    %872 = vmatpush1.msra.mxu0 0.0
    %873 = vmatprep.subr.mxu0 0.0
    %874 = vmatpush1.msra.mxu0 0.0
    %875 = vmatprep.subr.mxu0 0.0
    %876 = vmatpush1.msra.mxu0 0.0
    %877 = vmatprep.subr.mxu0 0.0
    %878 = vmatpush1.msra.mxu0 0.0
    %879 = vmatprep.subr.mxu0 0.0
    %880 = vmatpush1.msra.mxu0 0.0
    %881 = vmatprep.subr.mxu0 0.0
    %882 = vmatpush1.msra.mxu0 0.0
    %883 = vmatprep.subr.mxu0 0.0
    %884 = vmatpush1.msra.mxu0 0.0
    %885 = vmatprep.subr.mxu0 0.0
    %886 = vmatpush1.msra.mxu0 0.0
    %887 = vmatprep.subr.mxu0 0.0
    %888 = vmatpush1.msra.mxu0 0.0
    %889 = vmatprep.subr.mxu0 0.0
    %890 = vmatpush1.msra.mxu0 0.0
    %891 = vmatprep.subr.mxu0 0.0
    %892 = vmatpush1.msra.mxu0 0.0
    %893 = vmatprep.subr.mxu0 0.0
    %894 = vmatpush1.msra.mxu0 0.0
    %895 = vmatprep.subr.mxu0 0.0
    %896 = vmatpush1.msra.mxu0 %v63
    %897 = vmatprep.subr.mxu0 0.0
    %898 = vmatpush1.msra.mxu0 %v62
    %899 = vmatprep.subr.mxu0 0.0
    %900 = vmatpush1.msra.mxu0 %v61
    %901 = vmatprep.subr.mxu0 0.0
    %902 = vmatpush1.msra.mxu0 %v60
    %903 = vmatprep.subr.mxu0 0.0
    %904 = vmatpush2.msra.mxu0 0.0
    %905 = vmatprep.subr.mxu0 0.0
    %906 = vmatpush2.msra.mxu0 0.0
    %907 = vmatprep.subr.mxu0 0.0
    %908 = vmatpush2.msra.mxu0 0.0
    %909 = vmatprep.subr.mxu0 0.0
    %910 = vmatpush2.msra.mxu0 0.0
    %911 = vmatprep.subr.mxu0 0.0
    %912 = vmatpush2.msra.mxu0 0.0
    %913 = vmatprep.subr.mxu0 0.0
    %914 = vmatpush2.msra.mxu0 0.0
    %915 = vmatprep.subr.mxu0 0.0
    %916 = vmatpush2.msra.mxu0 0.0
    %917 = vmatprep.subr.mxu0 0.0
    %918 = vmatpush2.msra.mxu0 0.0
    %919 = vmatprep.subr.mxu0 0.0
    %920 = vmatpush2.msra.mxu0 0.0
    %921 = vmatprep.subr.mxu0 0.0
    %922 = vmatpush2.msra.mxu0 0.0
    %923 = vmatprep.subr.mxu0 0.0
    %924 = vmatpush2.msra.mxu0 0.0
    %925 = vmatprep.subr.mxu0 0.0
    %926 = vmatpush2.msra.mxu0 0.0
    %927 = vmatprep.subr.mxu0 0.0
    %928 = vmatpush2.msra.mxu0 0.0
    %929 = vmatprep.subr.mxu0 0.0
    %930 = vmatpush2.msra.mxu0 0.0
    %931 = vmatprep.subr.mxu0 0.0
    %932 = vmatpush2.msra.mxu0 0.0
    %933 = vmatprep.subr.mxu0 0.0
    %934 = vmatpush2.msra.mxu0 0.0
    %935 = vmatprep.mubr.f32.mxu0 0.0
    %936 = vmatmul.mubr.f32.gmra.mxu0 %v869
    %v937 = vpop.f32.mrf.mxu0
    %v938 = vadd.f32 %v840, %v937
    %v939 = vpop.f32.mrf.mxu0
    %940 = vdwg.mxu0
    %v941 = vadd.f32 %v938, %v69
    %v942 = vmul.f32 %v941, %v76
    %v943 = vtanh.pop %v942
    %v944 = vmul.f32 %v943, %v76
    %v945 = vadd.f32 %v944, %v77
    %v946 = vmul.f32 %v945, %v755
    %948 = vrot.lane.b32.xlu0 %v945, 64
    %v949 = vpop.permute.xlu0 %948
    %v951 = vmul.f32 %v945, %v949
    %953 = vrot.lane.b32.xlu0 %v951, 32
    %v954 = vpop.permute.xlu0 %953
    %v956 = vadd.f32 %v946, %v954
    %v957 = vtanh.pop %v956
    %959 = vrot.lane.b32.xlu0 %v957, 64
    %v960 = vpop.permute.xlu0 %959
    %v962 = vmul.f32 %v945, %v960
    %965 = vrot.lane.b32.xlu0 %v962, 64
    %v966 = vpop.permute.xlu0 %965
    %v968 = vsel %vm265, %v868, %v966
    %v970 = vsel %vm164, %v968, 0
    %972 = vmatprep.subr.mxu0 0.0
    %973 = vmatpush1.msra.mxu0 0.0
    %974 = vmatprep.subr.mxu0 0.0
    %975 = vmatpush1.msra.mxu0 0.0
    %976 = vmatprep.subr.mxu0 0.0
    %977 = vmatpush1.msra.mxu0 0.0
    %978 = vmatprep.subr.mxu0 0.0
    %979 = vmatpush1.msra.mxu0 0.0
    %980 = vmatprep.subr.mxu0 0.0
    %981 = vmatpush1.msra.mxu0 0.0
    %982 = vmatprep.subr.mxu0 0.0
    %983 = vmatpush1.msra.mxu0 0.0
    %984 = vmatprep.subr.mxu0 0.0
    %985 = vmatpush1.msra.mxu0 0.0
    %986 = vmatprep.subr.mxu0 0.0
    %987 = vmatpush1.msra.mxu0 0.0
    %988 = vmatprep.subr.mxu0 %v59
    %989 = vmatpush1.msra.mxu0 %v58
    %990 = vmatprep.subr.mxu0 %v57
    %991 = vmatpush1.msra.mxu0 %v56
    %992 = vmatprep.subr.mxu0 %v55
    %993 = vmatpush1.msra.mxu0 %v54
    %994 = vmatprep.subr.mxu0 %v53
    %995 = vmatpush1.msra.mxu0 %v52
    %996 = vmatprep.subr.mxu0 %v51
    %997 = vmatpush1.msra.mxu0 %v50
    %998 = vmatprep.subr.mxu0 %v49
    %999 = vmatpush1.msra.mxu0 %v48
    %1000 = vmatprep.subr.mxu0 %v47
    %1001 = vmatpush1.msra.mxu0 %v46
    %1002 = vmatprep.subr.mxu0 %v45
    %1003 = vmatpush1.msra.mxu0 %v44
    %1004 = vmatprep.subr.mxu0 0.0
    %1005 = vmatpush2.msra.mxu0 0.0
    %1006 = vmatprep.subr.mxu0 0.0
    %1007 = vmatpush2.msra.mxu0 0.0
    %1008 = vmatprep.subr.mxu0 0.0
    %1009 = vmatpush2.msra.mxu0 0.0
    %1010 = vmatprep.subr.mxu0 0.0
    %1011 = vmatpush2.msra.mxu0 0.0
    %1012 = vmatprep.subr.mxu0 0.0
    %1013 = vmatpush2.msra.mxu0 0.0
    %1014 = vmatprep.subr.mxu0 0.0
    %1015 = vmatpush2.msra.mxu0 0.0
    %1016 = vmatprep.subr.mxu0 0.0
    %1017 = vmatpush2.msra.mxu0 0.0
    %1018 = vmatprep.subr.mxu0 0.0
    %1019 = vmatpush2.msra.mxu0 0.0
    %1020 = vmatprep.subr.mxu0 0.0
    %1021 = vmatpush2.msra.mxu0 0.0
    %1022 = vmatprep.subr.mxu0 0.0
    %1023 = vmatpush2.msra.mxu0 0.0
    %1024 = vmatprep.subr.mxu0 0.0
    %1025 = vmatpush2.msra.mxu0 0.0
    %1026 = vmatprep.subr.mxu0 0.0
    %1027 = vmatpush2.msra.mxu0 0.0
    %1028 = vmatprep.subr.mxu0 0.0
    %1029 = vmatpush2.msra.mxu0 0.0
    %1030 = vmatprep.subr.mxu0 0.0
    %1031 = vmatpush2.msra.mxu0 0.0
    %1032 = vmatprep.subr.mxu0 0.0
    %1033 = vmatpush2.msra.mxu0 0.0
    %1034 = vmatprep.subr.mxu0 0.0
    %1035 = vmatpush2.msra.mxu0 0.0
    %1036 = vmatprep.mubr.f32.mxu0 0.0
    %1037 = vmatmul.mubr.f32.gmra.mxu0 %v970
    %v1038 = vpop.f32.mrf.mxu0
    %v1039 = vadd.f32 0.0, %v1038
    %v1040 = vpop.f32.mrf.mxu0
    %v1041 = vadd.f32 0.0, %v1040
    %1042 = vdwg.mxu0
    %s1043 = scalar_lea.vmem [#allocation2], 32
    %v1044 = vld [vmem:[%s1043] sm:$0xff]
    %v1045 = vadd.f32 %v1044, %v1039
    %v1046 = vmul.f32 %v1045, %v76
    %v1047 = vtanh.pop %v1046
    %v1048 = vmul.f32 %v1047, %v76
    %v1049 = vadd.f32 %v1048, %v77
    %v1050 = vmul.f32 %v1049, %v859
    %1052 = vrot.lane.b32.xlu0 %v1049, 64
    %v1053 = vpop.permute.xlu0 %1052
    %v1055 = vmul.f32 %v1049, %v1053
    %1057 = vrot.lane.b32.xlu0 %v1055, 32
    %v1058 = vpop.permute.xlu0 %1057
    %v1060 = vadd.f32 %v1050, %v1058
    %v1061 = vtanh.pop %v1060
    %1063 = vrot.lane.b32.xlu0 %v1061, 64
    %v1064 = vpop.permute.xlu0 %1063
    %v1066 = vmul.f32 %v1049, %v1064
    %1068 = vrot.lane.b32.xlu0 %v1066, 32
    %v1069 = vpop.permute.xlu0 %1068
    %v1070 = vsel %vm265, %v1069, 0
    %1072 = vmatprep.subr.mxu0 0.0
    %1073 = vmatpush1.msra.mxu0 0.0
    %1074 = vmatprep.subr.mxu0 0.0
    %1075 = vmatpush1.msra.mxu0 0.0
    %1076 = vmatprep.subr.mxu0 0.0
    %1077 = vmatpush1.msra.mxu0 0.0
    %1078 = vmatprep.subr.mxu0 0.0
    %1079 = vmatpush1.msra.mxu0 0.0
    %1080 = vmatprep.subr.mxu0 0.0
    %1081 = vmatpush1.msra.mxu0 0.0
    %1082 = vmatprep.subr.mxu0 0.0
    %1083 = vmatpush1.msra.mxu0 0.0
    %1084 = vmatprep.subr.mxu0 0.0
    %1085 = vmatpush1.msra.mxu0 0.0
    %1086 = vmatprep.subr.mxu0 0.0
    %1087 = vmatpush1.msra.mxu0 0.0
    %1088 = vmatprep.subr.mxu0 0.0
    %1089 = vmatpush1.msra.mxu0 0.0
    %1090 = vmatprep.subr.mxu0 0.0
    %1091 = vmatpush1.msra.mxu0 0.0
    %1092 = vmatprep.subr.mxu0 0.0
    %1093 = vmatpush1.msra.mxu0 0.0
    %1094 = vmatprep.subr.mxu0 0.0
    %1095 = vmatpush1.msra.mxu0 0.0
    %1096 = vmatprep.subr.mxu0 0.0
    %1097 = vmatpush1.msra.mxu0 %v63
    %1098 = vmatprep.subr.mxu0 0.0
    %1099 = vmatpush1.msra.mxu0 %v62
    %1100 = vmatprep.subr.mxu0 0.0
    %1101 = vmatpush1.msra.mxu0 %v61
    %1102 = vmatprep.subr.mxu0 0.0
    %1103 = vmatpush1.msra.mxu0 %v60
    %1104 = vmatprep.subr.mxu0 0.0
    %1105 = vmatpush2.msra.mxu0 0.0
    %1106 = vmatprep.subr.mxu0 0.0
    %1107 = vmatpush2.msra.mxu0 0.0
    %1108 = vmatprep.subr.mxu0 0.0
    %1109 = vmatpush2.msra.mxu0 0.0
    %1110 = vmatprep.subr.mxu0 0.0
    %1111 = vmatpush2.msra.mxu0 0.0
    %1112 = vmatprep.subr.mxu0 0.0
    %1113 = vmatpush2.msra.mxu0 0.0
    %1114 = vmatprep.subr.mxu0 0.0
    %1115 = vmatpush2.msra.mxu0 0.0
    %1116 = vmatprep.subr.mxu0 0.0
    %1117 = vmatpush2.msra.mxu0 0.0
    %1118 = vmatprep.subr.mxu0 0.0
    %1119 = vmatpush2.msra.mxu0 0.0
    %1120 = vmatprep.subr.mxu0 0.0
    %1121 = vmatpush2.msra.mxu0 0.0
    %1122 = vmatprep.subr.mxu0 0.0
    %1123 = vmatpush2.msra.mxu0 0.0
    %1124 = vmatprep.subr.mxu0 0.0
    %1125 = vmatpush2.msra.mxu0 0.0
    %1126 = vmatprep.subr.mxu0 0.0
    %1127 = vmatpush2.msra.mxu0 0.0
    %1128 = vmatprep.subr.mxu0 0.0
    %1129 = vmatpush2.msra.mxu0 0.0
    %1130 = vmatprep.subr.mxu0 0.0
    %1131 = vmatpush2.msra.mxu0 0.0
    %1132 = vmatprep.subr.mxu0 0.0
    %1133 = vmatpush2.msra.mxu0 0.0
    %1134 = vmatprep.subr.mxu0 0.0
    %1135 = vmatpush2.msra.mxu0 0.0
    %1136 = vmatprep.mubr.f32.mxu0 0.0
    %1137 = vmatmul.mubr.f32.gmra.mxu0 %v1070
    %v1138 = vpop.f32.mrf.mxu0
    %v1139 = vadd.f32 %v1041, %v1138
    %v1140 = vpop.f32.mrf.mxu0
    %1141 = vdwg.mxu0
    %v1142 = vadd.f32 %v1139, %v69
    %v1143 = vmul.f32 %v1142, %v76
    %v1144 = vtanh.pop %v1143
    %v1145 = vmul.f32 %v1144, %v76
    %v1146 = vadd.f32 %v1145, %v77
    %v1147 = vmul.f32 %v1146, %v956
    %1149 = vrot.lane.b32.xlu0 %v1146, 64
    %v1150 = vpop.permute.xlu0 %1149
    %v1152 = vmul.f32 %v1146, %v1150
    %1154 = vrot.lane.b32.xlu0 %v1152, 32
    %v1155 = vpop.permute.xlu0 %1154
    %v1157 = vadd.f32 %v1147, %v1155
    %v1158 = vtanh.pop %v1157
    %1160 = vrot.lane.b32.xlu0 %v1158, 64
    %v1161 = vpop.permute.xlu0 %1160
    %v1163 = vmul.f32 %v1146, %v1161
    %1166 = vrot.lane.b32.xlu0 %v1163, 64
    %v1167 = vpop.permute.xlu0 %1166
    %v1169 = vsel %vm265, %v1069, %v1167
    %v1171 = vsel %vm164, %v1169, 0
    %1173 = vmatprep.subr.mxu0 0.0
    %1174 = vmatpush1.msra.mxu0 0.0
    %1175 = vmatprep.subr.mxu0 0.0
    %1176 = vmatpush1.msra.mxu0 0.0
    %1177 = vmatprep.subr.mxu0 0.0
    %1178 = vmatpush1.msra.mxu0 0.0
    %1179 = vmatprep.subr.mxu0 0.0
    %1180 = vmatpush1.msra.mxu0 0.0
    %1181 = vmatprep.subr.mxu0 0.0
    %1182 = vmatpush1.msra.mxu0 0.0
    %1183 = vmatprep.subr.mxu0 0.0
    %1184 = vmatpush1.msra.mxu0 0.0
    %1185 = vmatprep.subr.mxu0 0.0
    %1186 = vmatpush1.msra.mxu0 0.0
    %1187 = vmatprep.subr.mxu0 0.0
    %1188 = vmatpush1.msra.mxu0 0.0
    %1189 = vmatprep.subr.mxu0 %v59
    %1190 = vmatpush1.msra.mxu0 %v58
    %1191 = vmatprep.subr.mxu0 %v57
    %1192 = vmatpush1.msra.mxu0 %v56
    %1193 = vmatprep.subr.mxu0 %v55
    %1194 = vmatpush1.msra.mxu0 %v54
    %1195 = vmatprep.subr.mxu0 %v53
    %1196 = vmatpush1.msra.mxu0 %v52
    %1197 = vmatprep.subr.mxu0 %v51
    %1198 = vmatpush1.msra.mxu0 %v50
    %1199 = vmatprep.subr.mxu0 %v49
    %1200 = vmatpush1.msra.mxu0 %v48
    %1201 = vmatprep.subr.mxu0 %v47
    %1202 = vmatpush1.msra.mxu0 %v46
    %1203 = vmatprep.subr.mxu0 %v45
    %1204 = vmatpush1.msra.mxu0 %v44
    %1205 = vmatprep.subr.mxu0 0.0
    %1206 = vmatpush2.msra.mxu0 0.0
    %1207 = vmatprep.subr.mxu0 0.0
    %1208 = vmatpush2.msra.mxu0 0.0
    %1209 = vmatprep.subr.mxu0 0.0
    %1210 = vmatpush2.msra.mxu0 0.0
    %1211 = vmatprep.subr.mxu0 0.0
    %1212 = vmatpush2.msra.mxu0 0.0
    %1213 = vmatprep.subr.mxu0 0.0
    %1214 = vmatpush2.msra.mxu0 0.0
    %1215 = vmatprep.subr.mxu0 0.0
    %1216 = vmatpush2.msra.mxu0 0.0
    %1217 = vmatprep.subr.mxu0 0.0
    %1218 = vmatpush2.msra.mxu0 0.0
    %1219 = vmatprep.subr.mxu0 0.0
    %1220 = vmatpush2.msra.mxu0 0.0
    %1221 = vmatprep.subr.mxu0 0.0
    %1222 = vmatpush2.msra.mxu0 0.0
    %1223 = vmatprep.subr.mxu0 0.0
    %1224 = vmatpush2.msra.mxu0 0.0
    %1225 = vmatprep.subr.mxu0 0.0
    %1226 = vmatpush2.msra.mxu0 0.0
    %1227 = vmatprep.subr.mxu0 0.0
    %1228 = vmatpush2.msra.mxu0 0.0
    %1229 = vmatprep.subr.mxu0 0.0
    %1230 = vmatpush2.msra.mxu0 0.0
    %1231 = vmatprep.subr.mxu0 0.0
    %1232 = vmatpush2.msra.mxu0 0.0
    %1233 = vmatprep.subr.mxu0 0.0
    %1234 = vmatpush2.msra.mxu0 0.0
    %1235 = vmatprep.subr.mxu0 0.0
    %1236 = vmatpush2.msra.mxu0 0.0
    %1237 = vmatprep.mubr.f32.mxu0 0.0
    %1238 = vmatmul.mubr.f32.gmra.mxu0 %v1171
    %v1239 = vpop.f32.mrf.mxu0
    %v1240 = vadd.f32 0.0, %v1239
    %v1241 = vpop.f32.mrf.mxu0
    %v1242 = vadd.f32 0.0, %v1241
    %1243 = vdwg.mxu0
    %s1244 = scalar_lea.vmem [#allocation2], 40
    %v1245 = vld [vmem:[%s1244] sm:$0xff]
    %v1246 = vadd.f32 %v1245, %v1240
    %v1247 = vmul.f32 %v1246, %v76
    %v1248 = vtanh.pop %v1247
    %v1249 = vmul.f32 %v1248, %v76
    %v1250 = vadd.f32 %v1249, %v77
    %v1251 = vmul.f32 %v1250, %v1060
    %1253 = vrot.lane.b32.xlu0 %v1250, 64
    %v1254 = vpop.permute.xlu0 %1253
    %v1256 = vmul.f32 %v1250, %v1254
    %1258 = vrot.lane.b32.xlu0 %v1256, 32
    %v1259 = vpop.permute.xlu0 %1258
    %v1261 = vadd.f32 %v1251, %v1259
    %v1262 = vtanh.pop %v1261
    %1264 = vrot.lane.b32.xlu0 %v1262, 64
    %v1265 = vpop.permute.xlu0 %1264
    %v1267 = vmul.f32 %v1250, %v1265
    %1269 = vrot.lane.b32.xlu0 %v1267, 32
    %v1270 = vpop.permute.xlu0 %1269
    %v1271 = vsel %vm265, %v1270, 0
    %1273 = vmatprep.subr.mxu0 0.0
    %1274 = vmatpush1.msra.mxu0 0.0
    %1275 = vmatprep.subr.mxu0 0.0
    %1276 = vmatpush1.msra.mxu0 0.0
    %1277 = vmatprep.subr.mxu0 0.0
    %1278 = vmatpush1.msra.mxu0 0.0
    %1279 = vmatprep.subr.mxu0 0.0
    %1280 = vmatpush1.msra.mxu0 0.0
    %1281 = vmatprep.subr.mxu0 0.0
    %1282 = vmatpush1.msra.mxu0 0.0
    %1283 = vmatprep.subr.mxu0 0.0
    %1284 = vmatpush1.msra.mxu0 0.0
    %1285 = vmatprep.subr.mxu0 0.0
    %1286 = vmatpush1.msra.mxu0 0.0
    %1287 = vmatprep.subr.mxu0 0.0
    %1288 = vmatpush1.msra.mxu0 0.0
    %1289 = vmatprep.subr.mxu0 0.0
    %1290 = vmatpush1.msra.mxu0 0.0
    %1291 = vmatprep.subr.mxu0 0.0
    %1292 = vmatpush1.msra.mxu0 0.0
    %1293 = vmatprep.subr.mxu0 0.0
    %1294 = vmatpush1.msra.mxu0 0.0
    %1295 = vmatprep.subr.mxu0 0.0
    %1296 = vmatpush1.msra.mxu0 0.0
    %1297 = vmatprep.subr.mxu0 0.0
    %1298 = vmatpush1.msra.mxu0 %v63
    %1299 = vmatprep.subr.mxu0 0.0
    %1300 = vmatpush1.msra.mxu0 %v62
    %1301 = vmatprep.subr.mxu0 0.0
    %1302 = vmatpush1.msra.mxu0 %v61
    %1303 = vmatprep.subr.mxu0 0.0
    %1304 = vmatpush1.msra.mxu0 %v60
    %1305 = vmatprep.subr.mxu0 0.0
    %1306 = vmatpush2.msra.mxu0 0.0
    %1307 = vmatprep.subr.mxu0 0.0
    %1308 = vmatpush2.msra.mxu0 0.0
    %1309 = vmatprep.subr.mxu0 0.0
    %1310 = vmatpush2.msra.mxu0 0.0
    %1311 = vmatprep.subr.mxu0 0.0
    %1312 = vmatpush2.msra.mxu0 0.0
    %1313 = vmatprep.subr.mxu0 0.0
    %1314 = vmatpush2.msra.mxu0 0.0
    %1315 = vmatprep.subr.mxu0 0.0
    %1316 = vmatpush2.msra.mxu0 0.0
    %1317 = vmatprep.subr.mxu0 0.0
    %1318 = vmatpush2.msra.mxu0 0.0
    %1319 = vmatprep.subr.mxu0 0.0
    %1320 = vmatpush2.msra.mxu0 0.0
    %1321 = vmatprep.subr.mxu0 0.0
    %1322 = vmatpush2.msra.mxu0 0.0
    %1323 = vmatprep.subr.mxu0 0.0
    %1324 = vmatpush2.msra.mxu0 0.0
    %1325 = vmatprep.subr.mxu0 0.0
    %1326 = vmatpush2.msra.mxu0 0.0
    %1327 = vmatprep.subr.mxu0 0.0
    %1328 = vmatpush2.msra.mxu0 0.0
    %1329 = vmatprep.subr.mxu0 0.0
    %1330 = vmatpush2.msra.mxu0 0.0
    %1331 = vmatprep.subr.mxu0 0.0
    %1332 = vmatpush2.msra.mxu0 0.0
    %1333 = vmatprep.subr.mxu0 0.0
    %1334 = vmatpush2.msra.mxu0 0.0
    %1335 = vmatprep.subr.mxu0 0.0
    %1336 = vmatpush2.msra.mxu0 0.0
    %1337 = vmatprep.mubr.f32.mxu0 0.0
    %1338 = vmatmul.mubr.f32.gmra.mxu0 %v1271
    %v1339 = vpop.f32.mrf.mxu0
    %v1340 = vadd.f32 %v1242, %v1339
    %v1341 = vpop.f32.mrf.mxu0
    %1342 = vdwg.mxu0
    %v1343 = vadd.f32 %v1340, %v69
    %v1344 = vmul.f32 %v1343, %v76
    %v1345 = vtanh.pop %v1344
    %v1346 = vmul.f32 %v1345, %v76
    %v1347 = vadd.f32 %v1346, %v77
    %v1348 = vmul.f32 %v1347, %v1157
    %1350 = vrot.lane.b32.xlu0 %v1347, 64
    %v1351 = vpop.permute.xlu0 %1350
    %v1353 = vmul.f32 %v1347, %v1351
    %1355 = vrot.lane.b32.xlu0 %v1353, 32
    %v1356 = vpop.permute.xlu0 %1355
    %v1358 = vadd.f32 %v1348, %v1356
    %v1359 = vtanh.pop %v1358
    %1361 = vrot.lane.b32.xlu0 %v1359, 64
    %v1362 = vpop.permute.xlu0 %1361
    %v1364 = vmul.f32 %v1347, %v1362
    %1367 = vrot.lane.b32.xlu0 %v1364, 64
    %v1368 = vpop.permute.xlu0 %1367
    %v1370 = vsel %vm265, %v1270, %v1368
    %v1372 = vsel %vm164, %v1370, 0
    %1374 = vmatprep.subr.mxu0 0.0
    %1375 = vmatpush1.msra.mxu0 0.0
    %1376 = vmatprep.subr.mxu0 0.0
    %1377 = vmatpush1.msra.mxu0 0.0
    %1378 = vmatprep.subr.mxu0 0.0
    %1379 = vmatpush1.msra.mxu0 0.0
    %1380 = vmatprep.subr.mxu0 0.0
    %1381 = vmatpush1.msra.mxu0 0.0
    %1382 = vmatprep.subr.mxu0 0.0
    %1383 = vmatpush1.msra.mxu0 0.0
    %1384 = vmatprep.subr.mxu0 0.0
    %1385 = vmatpush1.msra.mxu0 0.0
    %1386 = vmatprep.subr.mxu0 0.0
    %1387 = vmatpush1.msra.mxu0 0.0
    %1388 = vmatprep.subr.mxu0 0.0
    %1389 = vmatpush1.msra.mxu0 0.0
    %1390 = vmatprep.subr.mxu0 %v59
    %1391 = vmatpush1.msra.mxu0 %v58
    %1392 = vmatprep.subr.mxu0 %v57
    %1393 = vmatpush1.msra.mxu0 %v56
    %1394 = vmatprep.subr.mxu0 %v55
    %1395 = vmatpush1.msra.mxu0 %v54
    %1396 = vmatprep.subr.mxu0 %v53
    %1397 = vmatpush1.msra.mxu0 %v52
    %1398 = vmatprep.subr.mxu0 %v51
    %1399 = vmatpush1.msra.mxu0 %v50
    %1400 = vmatprep.subr.mxu0 %v49
    %1401 = vmatpush1.msra.mxu0 %v48
    %1402 = vmatprep.subr.mxu0 %v47
    %1403 = vmatpush1.msra.mxu0 %v46
    %1404 = vmatprep.subr.mxu0 %v45
    %1405 = vmatpush1.msra.mxu0 %v44
    %1406 = vmatprep.subr.mxu0 0.0
    %1407 = vmatpush2.msra.mxu0 0.0
    %1408 = vmatprep.subr.mxu0 0.0
    %1409 = vmatpush2.msra.mxu0 0.0
    %1410 = vmatprep.subr.mxu0 0.0
    %1411 = vmatpush2.msra.mxu0 0.0
    %1412 = vmatprep.subr.mxu0 0.0
    %1413 = vmatpush2.msra.mxu0 0.0
    %1414 = vmatprep.subr.mxu0 0.0
    %1415 = vmatpush2.msra.mxu0 0.0
    %1416 = vmatprep.subr.mxu0 0.0
    %1417 = vmatpush2.msra.mxu0 0.0
    %1418 = vmatprep.subr.mxu0 0.0
    %1419 = vmatpush2.msra.mxu0 0.0
    %1420 = vmatprep.subr.mxu0 0.0
    %1421 = vmatpush2.msra.mxu0 0.0
    %1422 = vmatprep.subr.mxu0 0.0
    %1423 = vmatpush2.msra.mxu0 0.0
    %1424 = vmatprep.subr.mxu0 0.0
    %1425 = vmatpush2.msra.mxu0 0.0
    %1426 = vmatprep.subr.mxu0 0.0
    %1427 = vmatpush2.msra.mxu0 0.0
    %1428 = vmatprep.subr.mxu0 0.0
    %1429 = vmatpush2.msra.mxu0 0.0
    %1430 = vmatprep.subr.mxu0 0.0
    %1431 = vmatpush2.msra.mxu0 0.0
    %1432 = vmatprep.subr.mxu0 0.0
    %1433 = vmatpush2.msra.mxu0 0.0
    %1434 = vmatprep.subr.mxu0 0.0
    %1435 = vmatpush2.msra.mxu0 0.0
    %1436 = vmatprep.subr.mxu0 0.0
    %1437 = vmatpush2.msra.mxu0 0.0
    %1438 = vmatprep.mubr.f32.mxu0 0.0
    %1439 = vmatmul.mubr.f32.gmra.mxu0 %v1372
    %v1440 = vpop.f32.mrf.mxu0
    %v1441 = vadd.f32 0.0, %v1440
    %v1442 = vpop.f32.mrf.mxu0
    %v1443 = vadd.f32 0.0, %v1442
    %1444 = vdwg.mxu0
    %s1445 = scalar_lea.vmem [#allocation2], 48
    %v1446 = vld [vmem:[%s1445] sm:$0xff]
    %v1447 = vadd.f32 %v1446, %v1441
    %v1448 = vmul.f32 %v1447, %v76
    %v1449 = vtanh.pop %v1448
    %v1450 = vmul.f32 %v1449, %v76
    %v1451 = vadd.f32 %v1450, %v77
    %v1452 = vmul.f32 %v1451, %v1261
    %1454 = vrot.lane.b32.xlu0 %v1451, 64
    %v1455 = vpop.permute.xlu0 %1454
    %v1457 = vmul.f32 %v1451, %v1455
    %1459 = vrot.lane.b32.xlu0 %v1457, 32
    %v1460 = vpop.permute.xlu0 %1459
    %v1462 = vadd.f32 %v1452, %v1460
    %v1463 = vtanh.pop %v1462
    %1465 = vrot.lane.b32.xlu0 %v1463, 64
    %v1466 = vpop.permute.xlu0 %1465
    %v1468 = vmul.f32 %v1451, %v1466
    %1470 = vrot.lane.b32.xlu0 %v1468, 32
    %v1471 = vpop.permute.xlu0 %1470
    %v1472 = vsel %vm265, %v1471, 0
    %1474 = vmatprep.subr.mxu0 0.0
    %1475 = vmatpush1.msra.mxu0 0.0
    %1476 = vmatprep.subr.mxu0 0.0
    %1477 = vmatpush1.msra.mxu0 0.0
    %1478 = vmatprep.subr.mxu0 0.0
    %1479 = vmatpush1.msra.mxu0 0.0
    %1480 = vmatprep.subr.mxu0 0.0
    %1481 = vmatpush1.msra.mxu0 0.0
    %1482 = vmatprep.subr.mxu0 0.0
    %1483 = vmatpush1.msra.mxu0 0.0
    %1484 = vmatprep.subr.mxu0 0.0
    %1485 = vmatpush1.msra.mxu0 0.0
    %1486 = vmatprep.subr.mxu0 0.0
    %1487 = vmatpush1.msra.mxu0 0.0
    %1488 = vmatprep.subr.mxu0 0.0
    %1489 = vmatpush1.msra.mxu0 0.0
    %1490 = vmatprep.subr.mxu0 0.0
    %1491 = vmatpush1.msra.mxu0 0.0
    %1492 = vmatprep.subr.mxu0 0.0
    %1493 = vmatpush1.msra.mxu0 0.0
    %1494 = vmatprep.subr.mxu0 0.0
    %1495 = vmatpush1.msra.mxu0 0.0
    %1496 = vmatprep.subr.mxu0 0.0
    %1497 = vmatpush1.msra.mxu0 0.0
    %1498 = vmatprep.subr.mxu0 0.0
    %1499 = vmatpush1.msra.mxu0 %v63
    %1500 = vmatprep.subr.mxu0 0.0
    %1501 = vmatpush1.msra.mxu0 %v62
    %1502 = vmatprep.subr.mxu0 0.0
    %1503 = vmatpush1.msra.mxu0 %v61
    %1504 = vmatprep.subr.mxu0 0.0
    %1505 = vmatpush1.msra.mxu0 %v60
    %1506 = vmatprep.subr.mxu0 0.0
    %1507 = vmatpush2.msra.mxu0 0.0
    %1508 = vmatprep.subr.mxu0 0.0
    %1509 = vmatpush2.msra.mxu0 0.0
    %1510 = vmatprep.subr.mxu0 0.0
    %1511 = vmatpush2.msra.mxu0 0.0
    %1512 = vmatprep.subr.mxu0 0.0
    %1513 = vmatpush2.msra.mxu0 0.0
    %1514 = vmatprep.subr.mxu0 0.0
    %1515 = vmatpush2.msra.mxu0 0.0
    %1516 = vmatprep.subr.mxu0 0.0
    %1517 = vmatpush2.msra.mxu0 0.0
    %1518 = vmatprep.subr.mxu0 0.0
    %1519 = vmatpush2.msra.mxu0 0.0
    %1520 = vmatprep.subr.mxu0 0.0
    %1521 = vmatpush2.msra.mxu0 0.0
    %1522 = vmatprep.subr.mxu0 0.0
    %1523 = vmatpush2.msra.mxu0 0.0
    %1524 = vmatprep.subr.mxu0 0.0
    %1525 = vmatpush2.msra.mxu0 0.0
    %1526 = vmatprep.subr.mxu0 0.0
    %1527 = vmatpush2.msra.mxu0 0.0
    %1528 = vmatprep.subr.mxu0 0.0
    %1529 = vmatpush2.msra.mxu0 0.0
    %1530 = vmatprep.subr.mxu0 0.0
    %1531 = vmatpush2.msra.mxu0 0.0
    %1532 = vmatprep.subr.mxu0 0.0
    %1533 = vmatpush2.msra.mxu0 0.0
    %1534 = vmatprep.subr.mxu0 0.0
    %1535 = vmatpush2.msra.mxu0 0.0
    %1536 = vmatprep.subr.mxu0 0.0
    %1537 = vmatpush2.msra.mxu0 0.0
    %1538 = vmatprep.mubr.f32.mxu0 0.0
    %1539 = vmatmul.mubr.f32.gmra.mxu0 %v1472
    %v1540 = vpop.f32.mrf.mxu0
    %v1541 = vadd.f32 %v1443, %v1540
    %v1542 = vpop.f32.mrf.mxu0
    %1543 = vdwg.mxu0
    %v1544 = vadd.f32 %v1541, %v69
    %v1545 = vmul.f32 %v1544, %v76
    %v1546 = vtanh.pop %v1545
    %v1547 = vmul.f32 %v1546, %v76
    %v1548 = vadd.f32 %v1547, %v77
    %v1549 = vmul.f32 %v1548, %v1358
    %1551 = vrot.lane.b32.xlu0 %v1548, 64
    %v1552 = vpop.permute.xlu0 %1551
    %v1554 = vmul.f32 %v1548, %v1552
    %1556 = vrot.lane.b32.xlu0 %v1554, 32
    %v1557 = vpop.permute.xlu0 %1556
    %v1559 = vadd.f32 %v1549, %v1557
    %v1560 = vtanh.pop %v1559
    %1562 = vrot.lane.b32.xlu0 %v1560, 64
    %v1563 = vpop.permute.xlu0 %1562
    %v1565 = vmul.f32 %v1548, %v1563
    %1568 = vrot.lane.b32.xlu0 %v1565, 64
    %v1569 = vpop.permute.xlu0 %1568
    %v1571 = vsel %vm265, %v1471, %v1569
    %v1573 = vsel %vm164, %v1571, 0
    %1575 = vmatprep.subr.mxu0 0.0
    %1576 = vmatpush1.msra.mxu0 0.0
    %1577 = vmatprep.subr.mxu0 0.0
    %1578 = vmatpush1.msra.mxu0 0.0
    %1579 = vmatprep.subr.mxu0 0.0
    %1580 = vmatpush1.msra.mxu0 0.0
    %1581 = vmatprep.subr.mxu0 0.0
    %1582 = vmatpush1.msra.mxu0 0.0
    %1583 = vmatprep.subr.mxu0 0.0
    %1584 = vmatpush1.msra.mxu0 0.0
    %1585 = vmatprep.subr.mxu0 0.0
    %1586 = vmatpush1.msra.mxu0 0.0
    %1587 = vmatprep.subr.mxu0 0.0
    %1588 = vmatpush1.msra.mxu0 0.0
    %1589 = vmatprep.subr.mxu0 0.0
    %1590 = vmatpush1.msra.mxu0 0.0
    %1591 = vmatprep.subr.mxu0 %v59
    %1592 = vmatpush1.msra.mxu0 %v58
    %1593 = vmatprep.subr.mxu0 %v57
    %1594 = vmatpush1.msra.mxu0 %v56
    %1595 = vmatprep.subr.mxu0 %v55
    %1596 = vmatpush1.msra.mxu0 %v54
    %1597 = vmatprep.subr.mxu0 %v53
    %1598 = vmatpush1.msra.mxu0 %v52
    %1599 = vmatprep.subr.mxu0 %v51
    %1600 = vmatpush1.msra.mxu0 %v50
    %1601 = vmatprep.subr.mxu0 %v49
    %1602 = vmatpush1.msra.mxu0 %v48
    %1603 = vmatprep.subr.mxu0 %v47
    %1604 = vmatpush1.msra.mxu0 %v46
    %1605 = vmatprep.subr.mxu0 %v45
    %1606 = vmatpush1.msra.mxu0 %v44
    %1607 = vmatprep.subr.mxu0 0.0
    %1608 = vmatpush2.msra.mxu0 0.0
    %1609 = vmatprep.subr.mxu0 0.0
    %1610 = vmatpush2.msra.mxu0 0.0
    %1611 = vmatprep.subr.mxu0 0.0
    %1612 = vmatpush2.msra.mxu0 0.0
    %1613 = vmatprep.subr.mxu0 0.0
    %1614 = vmatpush2.msra.mxu0 0.0
    %1615 = vmatprep.subr.mxu0 0.0
    %1616 = vmatpush2.msra.mxu0 0.0
    %1617 = vmatprep.subr.mxu0 0.0
    %1618 = vmatpush2.msra.mxu0 0.0
    %1619 = vmatprep.subr.mxu0 0.0
    %1620 = vmatpush2.msra.mxu0 0.0
    %1621 = vmatprep.subr.mxu0 0.0
    %1622 = vmatpush2.msra.mxu0 0.0
    %1623 = vmatprep.subr.mxu0 0.0
    %1624 = vmatpush2.msra.mxu0 0.0
    %1625 = vmatprep.subr.mxu0 0.0
    %1626 = vmatpush2.msra.mxu0 0.0
    %1627 = vmatprep.subr.mxu0 0.0
    %1628 = vmatpush2.msra.mxu0 0.0
    %1629 = vmatprep.subr.mxu0 0.0
    %1630 = vmatpush2.msra.mxu0 0.0
    %1631 = vmatprep.subr.mxu0 0.0
    %1632 = vmatpush2.msra.mxu0 0.0
    %1633 = vmatprep.subr.mxu0 0.0
    %1634 = vmatpush2.msra.mxu0 0.0
    %1635 = vmatprep.subr.mxu0 0.0
    %1636 = vmatpush2.msra.mxu0 0.0
    %1637 = vmatprep.subr.mxu0 0.0
    %1638 = vmatpush2.msra.mxu0 0.0
    %1639 = vmatprep.mubr.f32.mxu0 0.0
    %1640 = vmatmul.mubr.f32.gmra.mxu0 %v1573
    %v1641 = vpop.f32.mrf.mxu0
    %v1642 = vadd.f32 0.0, %v1641
    %v1643 = vpop.f32.mrf.mxu0
    %v1644 = vadd.f32 0.0, %v1643
    %1645 = vdwg.mxu0
    %s1646 = scalar_lea.vmem [#allocation2], 56
    %v1647 = vld [vmem:[%s1646] sm:$0xff]
    %v1648 = vadd.f32 %v1647, %v1642
    %v1649 = vmul.f32 %v1648, %v76
    %v1650 = vtanh.pop %v1649
    %v1651 = vmul.f32 %v1650, %v76
    %v1652 = vadd.f32 %v1651, %v77
    %v1653 = vmul.f32 %v1652, %v1462
    %1655 = vrot.lane.b32.xlu0 %v1652, 64
    %v1656 = vpop.permute.xlu0 %1655
    %v1658 = vmul.f32 %v1652, %v1656
    %1660 = vrot.lane.b32.xlu0 %v1658, 32
    %v1661 = vpop.permute.xlu0 %1660
    %v1663 = vadd.f32 %v1653, %v1661
    %v1664 = vtanh.pop %v1663
    %1666 = vrot.lane.b32.xlu0 %v1664, 64
    %v1667 = vpop.permute.xlu0 %1666
    %v1669 = vmul.f32 %v1652, %v1667
    %1671 = vrot.lane.b32.xlu0 %v1669, 32
    %v1672 = vpop.permute.xlu0 %1671
    %v1673 = vsel %vm265, %v1672, 0
    %1675 = vmatprep.subr.mxu0 0.0
    %1676 = vmatpush1.msra.mxu0 0.0
    %1677 = vmatprep.subr.mxu0 0.0
    %1678 = vmatpush1.msra.mxu0 0.0
    %1679 = vmatprep.subr.mxu0 0.0
    %1680 = vmatpush1.msra.mxu0 0.0
    %1681 = vmatprep.subr.mxu0 0.0
    %1682 = vmatpush1.msra.mxu0 0.0
    %1683 = vmatprep.subr.mxu0 0.0
    %1684 = vmatpush1.msra.mxu0 0.0
    %1685 = vmatprep.subr.mxu0 0.0
    %1686 = vmatpush1.msra.mxu0 0.0
    %1687 = vmatprep.subr.mxu0 0.0
    %1688 = vmatpush1.msra.mxu0 0.0
    %1689 = vmatprep.subr.mxu0 0.0
    %1690 = vmatpush1.msra.mxu0 0.0
    %1691 = vmatprep.subr.mxu0 0.0
    %1692 = vmatpush1.msra.mxu0 0.0
    %1693 = vmatprep.subr.mxu0 0.0
    %1694 = vmatpush1.msra.mxu0 0.0
    %1695 = vmatprep.subr.mxu0 0.0
    %1696 = vmatpush1.msra.mxu0 0.0
    %1697 = vmatprep.subr.mxu0 0.0
    %1698 = vmatpush1.msra.mxu0 0.0
    %1699 = vmatprep.subr.mxu0 0.0
    %1700 = vmatpush1.msra.mxu0 %v63
    %1701 = vmatprep.subr.mxu0 0.0
    %1702 = vmatpush1.msra.mxu0 %v62
    %1703 = vmatprep.subr.mxu0 0.0
    %1704 = vmatpush1.msra.mxu0 %v61
    %1705 = vmatprep.subr.mxu0 0.0
    %1706 = vmatpush1.msra.mxu0 %v60
    %1707 = vmatprep.subr.mxu0 0.0
    %1708 = vmatpush2.msra.mxu0 0.0
    %1709 = vmatprep.subr.mxu0 0.0
    %1710 = vmatpush2.msra.mxu0 0.0
    %1711 = vmatprep.subr.mxu0 0.0
    %1712 = vmatpush2.msra.mxu0 0.0
    %1713 = vmatprep.subr.mxu0 0.0
    %1714 = vmatpush2.msra.mxu0 0.0
    %1715 = vmatprep.subr.mxu0 0.0
    %1716 = vmatpush2.msra.mxu0 0.0
    %1717 = vmatprep.subr.mxu0 0.0
    %1718 = vmatpush2.msra.mxu0 0.0
    %1719 = vmatprep.subr.mxu0 0.0
    %1720 = vmatpush2.msra.mxu0 0.0
    %1721 = vmatprep.subr.mxu0 0.0
    %1722 = vmatpush2.msra.mxu0 0.0
    %1723 = vmatprep.subr.mxu0 0.0
    %1724 = vmatpush2.msra.mxu0 0.0
    %1725 = vmatprep.subr.mxu0 0.0
    %1726 = vmatpush2.msra.mxu0 0.0
    %1727 = vmatprep.subr.mxu0 0.0
    %1728 = vmatpush2.msra.mxu0 0.0
    %1729 = vmatprep.subr.mxu0 0.0
    %1730 = vmatpush2.msra.mxu0 0.0
    %1731 = vmatprep.subr.mxu0 0.0
    %1732 = vmatpush2.msra.mxu0 0.0
    %1733 = vmatprep.subr.mxu0 0.0
    %1734 = vmatpush2.msra.mxu0 0.0
    %1735 = vmatprep.subr.mxu0 0.0
    %1736 = vmatpush2.msra.mxu0 0.0
    %1737 = vmatprep.subr.mxu0 0.0
    %1738 = vmatpush2.msra.mxu0 0.0
    %1739 = vmatprep.mubr.f32.mxu0 0.0
    %1740 = vmatmul.mubr.f32.gmra.mxu0 %v1673
    %v1741 = vpop.f32.mrf.mxu0
    %v1742 = vadd.f32 %v1644, %v1741
    %v1743 = vpop.f32.mrf.mxu0
    %1744 = vdwg.mxu0
    %v1745 = vadd.f32 %v1742, %v69
    %v1746 = vmul.f32 %v1745, %v76
    %v1747 = vtanh.pop %v1746
    %v1748 = vmul.f32 %v1747, %v76
    %v1749 = vadd.f32 %v1748, %v77
    %v1750 = vmul.f32 %v1749, %v1559
    %1752 = vrot.lane.b32.xlu0 %v1749, 64
    %v1753 = vpop.permute.xlu0 %1752
    %v1755 = vmul.f32 %v1749, %v1753
    %1757 = vrot.lane.b32.xlu0 %v1755, 32
    %v1758 = vpop.permute.xlu0 %1757
    %v1760 = vadd.f32 %v1750, %v1758
    %v1761 = vtanh.pop %v1760
    %1763 = vrot.lane.b32.xlu0 %v1761, 64
    %v1764 = vpop.permute.xlu0 %1763
    %v1766 = vmul.f32 %v1749, %v1764
    %1769 = vrot.lane.b32.xlu0 %v1766, 64
    %v1770 = vpop.permute.xlu0 %1769
    %v1772 = vsel %vm265, %v1672, %v1770
    %v1773 = vld [vmem:[%s6] sm:$0xff]
    %v1774 = vld [vmem:[%s6 + $0x8] sm:$0xff]
    %v1775 = vld [vmem:[%s6 + $0x10] sm:$0xff]
    %v1776 = vld [vmem:[%s6 + $0x18] sm:$0xff]
    %v1777 = vld [vmem:[%s7] sm:$0x1]
    %v1779 = vlaneseq
    %v1780 = vshrl.u32 %v1779, 7
    %v1781 = vsub.s32 0, %v1780
    %v1782 = vrot.slane %v1777, %v1781
    %1785 = vrot.lane.b32.xlu0 %v1772, 96
    %v1786 = vpop.permute.xlu0 %1785
    %v1787 = vsel %vm265, %v1786, 0
    %1789 = vmatprep.subr.mxu0 0.0
    %1790 = vmatpush1.msra.mxu0 0.0
    %1791 = vmatprep.subr.mxu0 0.0
    %1792 = vmatpush1.msra.mxu0 0.0
    %1793 = vmatprep.subr.mxu0 0.0
    %1794 = vmatpush1.msra.mxu0 0.0
    %1795 = vmatprep.subr.mxu0 0.0
    %1796 = vmatpush1.msra.mxu0 0.0
    %1797 = vmatprep.subr.mxu0 0.0
    %1798 = vmatpush1.msra.mxu0 0.0
    %1799 = vmatprep.subr.mxu0 0.0
    %1800 = vmatpush1.msra.mxu0 0.0
    %1801 = vmatprep.subr.mxu0 0.0
    %1802 = vmatpush1.msra.mxu0 0.0
    %1803 = vmatprep.subr.mxu0 0.0
    %1804 = vmatpush1.msra.mxu0 0.0
    %1805 = vmatprep.subr.mxu0 0.0
    %1806 = vmatpush1.msra.mxu0 0.0
    %1807 = vmatprep.subr.mxu0 0.0
    %1808 = vmatpush1.msra.mxu0 0.0
    %1809 = vmatprep.subr.mxu0 0.0
    %1810 = vmatpush1.msra.mxu0 0.0
    %1811 = vmatprep.subr.mxu0 0.0
    %1812 = vmatpush1.msra.mxu0 0.0
    %1813 = vmatprep.subr.mxu0 0.0
    %1814 = vmatpush1.msra.mxu0 %v1776
    %1815 = vmatprep.subr.mxu0 0.0
    %1816 = vmatpush1.msra.mxu0 %v1775
    %1817 = vmatprep.subr.mxu0 0.0
    %1818 = vmatpush1.msra.mxu0 %v1774
    %1819 = vmatprep.subr.mxu0 0.0
    %1820 = vmatpush1.msra.mxu0 %v1773
    %1821 = vmatprep.subr.mxu0 0.0
    %1822 = vmatpush2.msra.mxu0 0.0
    %1823 = vmatprep.subr.mxu0 0.0
    %1824 = vmatpush2.msra.mxu0 0.0
    %1825 = vmatprep.subr.mxu0 0.0
    %1826 = vmatpush2.msra.mxu0 0.0
    %1827 = vmatprep.subr.mxu0 0.0
    %1828 = vmatpush2.msra.mxu0 0.0
    %1829 = vmatprep.subr.mxu0 0.0
    %1830 = vmatpush2.msra.mxu0 0.0
    %1831 = vmatprep.subr.mxu0 0.0
    %1832 = vmatpush2.msra.mxu0 0.0
    %1833 = vmatprep.subr.mxu0 0.0
    %1834 = vmatpush2.msra.mxu0 0.0
    %1835 = vmatprep.subr.mxu0 0.0
    %1836 = vmatpush2.msra.mxu0 0.0
    %1837 = vmatprep.subr.mxu0 0.0
    %1838 = vmatpush2.msra.mxu0 0.0
    %1839 = vmatprep.subr.mxu0 0.0
    %1840 = vmatpush2.msra.mxu0 0.0
    %1841 = vmatprep.subr.mxu0 0.0
    %1842 = vmatpush2.msra.mxu0 0.0
    %1843 = vmatprep.subr.mxu0 0.0
    %1844 = vmatpush2.msra.mxu0 0.0
    %1845 = vmatprep.subr.mxu0 0.0
    %1846 = vmatpush2.msra.mxu0 0.0
    %1847 = vmatprep.subr.mxu0 0.0
    %1848 = vmatpush2.msra.mxu0 0.0
    %1849 = vmatprep.subr.mxu0 0.0
    %1850 = vmatpush2.msra.mxu0 0.0
    %1851 = vmatprep.subr.mxu0 0.0
    %1852 = vmatpush2.msra.mxu0 0.0
    %1853 = vmatprep.mubr.f32.mxu0 0.0
    %1854 = vmatmul.mubr.f32.gmra.mxu0 %v1787
    %v1855 = vpop.f32.mrf.mxu0
    %v1856 = vadd.f32 %v1782, %v1855
    %v1857 = vpop.f32.mrf.mxu0
    %1858 = vdwg.mxu0
    %1859 = vst [vmem:[#allocation6] sm:$0xff] %v1856
    // Predicated region
    $region38: #{tpu_custom_call.1} parent=1 // pred_check
      _
    $region39: #{tpu_custom_call.1} parent=1 // pred_check_branch
      %1861 = sbr.rel (0) target = $region41
    $region40: #{tpu_custom_call.1} parent=1 // pred_region
      %s1863 = ssub.s32 128, 128
      %1864 = vsyncadd [#allocation5], %s1863
      %s1866 = sshll.u32 [#allocation6], 4
      %s1867 = int_to_ptr.vmem [resolvable:$true] %s1866
      %1869 = dma.vmem_to_hbm [thread:$0]  %s1867, 128, %s8, [#allocation5]
    $region41: #{tpu_custom_call.1} parent=1 // pred_fallthru
      _
    // Predicated region
    $region42: #{tpu_custom_call.1} parent=1 // pred_check
      _
    $region43: #{tpu_custom_call.1} parent=1 // pred_check_branch
      %1871 = sbr.rel (0) target = $region45
    $region44: #{tpu_custom_call.1} parent=1 // pred_region
      %1872 = dma.done [#allocation5], 128
    $region45: #{tpu_custom_call.1} parent=1 // pred_fallthru
      _
    %1873 = vsyncpa [#allocation4], 1
    %1874 = vsyncpa [#allocation5], 1

</llo_original>
